<compile_context>
chip_gen: v7x
topology: tpu7x:2x2x1
jax: 0.10.0
libtpu: 0.0.40
codegen_flags: <defaults>
</compile_context>

<pallas_src>
import functools

import jax
import jax.numpy as jnp
from jax import lax
from jax.experimental import pallas as pl
from jax.experimental.pallas import tpu as pltpu


def _nlblock2d_kernel(x_ref, wq_ref, wkv_ref, out_ref, kv_ref, *,
                      n_valid, n_pad, tq, tk, compute_dtype, exp_dtype,
                      approx_recip):
    """One (batch, query-tile) grid step.

    x_ref  : (1, C, n_pad)  full padded spatial slab of x for this batch (f32).
             Block index is constant along q, so it is read from HBM once per
             batch; both the query tile and the K/V projection source are
             sliced from it.
    wq_ref : (C, C)   conv_mask2 weight                     (compute_dtype)
    wkv_ref: (2C, C)  rows [0:C]  = conv_mask3 weight (keys)
                      rows [C:2C] = w_add @ conv_mask1 (fused value weight)
    out_ref: (1, C, tq)
    kv_ref : VMEM scratch (2C, n_pad) compute_dtype; persists across the
             "arbitrary" q axis, recomputed at q == 0 for each batch.
    """
    C = wq_ref.shape[0]
    q = pl.program_id(1)

    # ---- K/V projection: once per batch (hoisted out of the q loop). -------
    @pl.when(q == 0)
    def _():
        kv = jnp.dot(wkv_ref[...], x_ref[0].astype(compute_dtype),
                     preferred_element_type=jnp.float32)           # (2C, n_pad)
        kv_ref[...] = kv.astype(compute_dtype)

    # ---- Query tile: sliced from the resident x slab (single HBM read). ----
    q_start = pl.multiple_of(q * tq, tq)
    x_q = x_ref[0, :, pl.ds(q_start, tq)]                          # (C, tq) f32

    # qm directly in (tq, C) layout: qm[i, o] = sum_c x_q[c, i] * wq[o, c],
    # so the logits matmul below is the natural (tq, C) @ (C, tk) form.
    qm = lax.dot_general(x_q.astype(compute_dtype), wq_ref[...],
                         dimension_numbers=(((0,), (1,)), ((), ())),
                         preferred_element_type=jnp.float32)       # (tq, C)
    qm_c = qm.astype(compute_dtype)

    # ---- Attention with online softmax over key tiles. ---------------------
    def tile_attn(kt_start, km, vm, m_i, l_i, acc):
        # logits for this key tile (f32 accumulation on the MXU).
        s = jnp.dot(qm_c, km, preferred_element_type=jnp.float32)  # (tq, tk')
        if n_valid < n_pad:
            # Mask padded key columns in f32, before any cast.
            key_ids = kt_start + lax.broadcasted_iota(jnp.int32, s.shape, 1)
            s = jnp.where(key_ids < n_valid, s, -1e30)
        m_new = jnp.maximum(m_i, jnp.max(s, axis=-1, keepdims=True))   # (tq,1)
        alpha = jnp.exp(m_i - m_new)                                   # (tq,1)
        # exp in exp_dtype (bf16 on v6e/v7x); max-subtraction stays f32.
        p = jnp.exp((s - m_new).astype(exp_dtype))                 # (tq, tk')
        l_new = alpha * l_i + jnp.sum(p.astype(jnp.float32), axis=-1,
                                      keepdims=True)
        # ctx[i, c] += sum_j p[i, j] * vm[c, j]  -> (tq, C)
        pc = lax.dot_general(p.astype(compute_dtype), vm,
                             dimension_numbers=(((1,), (1,)), ((), ())),
                             preferred_element_type=jnp.float32)
        return m_new, l_new, alpha * acc + pc

    m0 = jnp.full((tq, 1), -1e30, dtype=jnp.float32)
    l0 = jnp.zeros((tq, 1), dtype=jnp.float32)
    acc0 = jnp.zeros((tq, C), dtype=jnp.float32)

    n_kt = n_pad // tk
    if n_kt == 1:
        # Single key tile: one pass (rescale factors are trivially 0/1).
        _, l, acc = tile_attn(0, kv_ref[:C, :], kv_ref[C:, :], m0, l0, acc0)
    else:
        def body(kt, carry):
            ks = pl.multiple_of(kt * tk, tk)
            km = kv_ref[:C, pl.ds(ks, tk)]                         # (C, tk)
            vm = kv_ref[C:, pl.ds(ks, tk)]                         # (C, tk)
            return tile_attn(ks, km, vm, *carry)
        _, l, acc = lax.fori_loop(0, n_kt, body, (m0, l0, acc0))

    # Deferred softmax normalisation: one (tq, 1) reciprocal + tq*C multiplies.
    inv_l = pl.reciprocal(l, approx=approx_recip)
    ctx = acc * inv_l                                              # (tq, C) f32

    # channel_add is already folded into vm; residual add in lane-dense
    # (C, tq) layout -- only the tiny (tq, C) -> (C, tq) transpose remains.
    out_ref[0] = x_q + ctx.T


def nlblock2d_forward(x, w1, w2, w3, w_add, *, compute_dtype=None,
                      max_key_tile=2048, approx_recip=True):
    """NLblock2d forward (pool='att', fusions=['channel_add']).

    x: (B, C, H, W) float32 NCHW.  w1/w2/w3: (C, C) conv_mask1/2/3 1x1 weights
    (squeezed from (C, C, 1, 1)).  w_add: (C, C) channel_add 1x1 conv weight.
    """
    B, C, H, W = x.shape
    N = H * W
    P, Ci = w_add.shape
    assert P == C and Ci == C, (
        "channel_add output planes must equal inplanes for the residual add")

    # bf16 MXU operands only pay off at reasonable channel counts; at tiny C
    # (and on v5e, which has no bf16 VPU/EUP) the casts are pure overhead.
    if compute_dtype is None:
        compute_dtype = jnp.bfloat16 if C >= 64 else jnp.float32
    compute_dtype = jnp.dtype(compute_dtype)

    # bf16 softmax exp only on bf16-EUP chips (v6e/v7x); f32 elsewhere.
    exp_dtype = jnp.dtype(jnp.float32)
    if compute_dtype == jnp.dtype(jnp.bfloat16):
        try:
            kind = jax.devices()[0].device_kind.lower()
            if ("v6" in kind) or ("v7" in kind):
                exp_dtype = jnp.dtype(jnp.bfloat16)
        except Exception:
            pass

    # Device VMEM capacity (v5e/v6e: 128 MiB, v7x: 64 MiB per TensorCore).
    try:
        vmem_cap = int(getattr(pltpu.get_tpu_info(), "vmem_capacity_bytes",
                               64 * 1024 * 1024))
    except Exception:
        vmem_cap = 64 * 1024 * 1024

    # Pad the flattened spatial dim to a lane-aligned multiple of 128.
    n_pad = ((N + 127) // 128) * 128

    # Key tile: bounds the live f32 logits/exp working set; must divide n_pad
    # (n_pad is a multiple of 128, so 128 always works as a fallback).
    max_key_tile = max(128, int(max_key_tile))
    tk = 128
    for cand in (2048, 1024, 512, 256):
        if cand <= max_key_tile and n_pad % cand == 0:
            tk = cand
            break

    # Query tile: generation-aware (cap at 256 on 64 MiB-VMEM parts); keep
    # ~3 live f32 (tq, tk) tiles (logits, exp, slack) under ~6 MiB.
    tq_cands = (512, 256, 128) if vmem_cap > 96 * 1024 * 1024 else (256, 128)
    tq = 128
    for cand in tq_cands:
        if n_pad % cand == 0 and 3 * 4 * cand * tk <= 6 * 1024 * 1024:
            tq = cand
            break

    x_flat = x.reshape(B, C, N)
    if n_pad != N:
        x_flat = jnp.pad(x_flat, ((0, 0), (0, 0), (0, n_pad - N)))

    # Fold the bias-free channel_add 1x1 conv into the value projection and
    # stack key/value weights into one (2C, C) operand.
    # NOTE: the fold is valid only because this module's channel_add branch is
    # a single linear conv (no LayerNorm/ReLU as in the canonical GCNet
    # bottleneck); do not reuse for that configuration.
    w_kv = jnp.concatenate([w3, w_add @ w1], axis=0).astype(compute_dtype)
    w_q = w2.astype(compute_dtype)

    # VMEM budget from the actual buffers (double-buffered pipeline inputs /
    # outputs + single-buffered kv scratch) plus working-set headroom, clamped
    # to ~75% of the physical capacity.
    csz = compute_dtype.itemsize
    buf_bytes = (2 * C * n_pad * 4          # x slab (f32), double-buffered
                 + 2 * C * tq * 4           # out tile (f32), double-buffered
                 + 2 * 3 * C * C * csz      # w_q + w_kv, double-buffered
                 + 2 * C * n_pad * csz)     # kv scratch (single copy)
    vmem_limit = min(int(0.75 * vmem_cap),
                     max(32 * 1024 * 1024, buf_bytes + 16 * 1024 * 1024))

    kernel = functools.partial(
        _nlblock2d_kernel, n_valid=N, n_pad=n_pad, tq=tq, tk=tk,
        compute_dtype=compute_dtype, exp_dtype=exp_dtype,
        approx_recip=approx_recip)

    out_flat = pl.pallas_call(
        kernel,
        out_shape=jax.ShapeDtypeStruct((B, C, n_pad), x.dtype),
        grid_spec=pltpu.PrefetchScalarGridSpec(
            num_scalar_prefetch=0,
            grid=(B, n_pad // tq),
            in_specs=[
                # x slab: constant block index along q -> one HBM read / batch.
                pl.BlockSpec((1, C, n_pad), lambda b, q: (b, 0, 0)),
                pl.BlockSpec((C, C), lambda b, q: (0, 0)),          # conv_mask2
                pl.BlockSpec((2 * C, C), lambda b, q: (0, 0)),      # [w3; w_add@w1]
            ],
            out_specs=pl.BlockSpec((1, C, tq), lambda b, q: (b, 0, q)),
            scratch_shapes=[pltpu.VMEM((2 * C, n_pad), compute_dtype)],
        ),
        compiler_params=pltpu.CompilerParams(
            # q must be "arbitrary": the kv scratch is resident across it.
            dimension_semantics=("parallel", "arbitrary"),
            vmem_limit_bytes=vmem_limit),
    )(x_flat, w_q, w_kv)

    return out_flat[:, :, :N].reshape(B, C, H, W)


def nlblock2d_reference(x, w1, w2, w3, w_add):
    """Pure-JAX (f32) reference mirroring the PyTorch forward exactly."""
    B, C, H, W = x.shape
    N = H * W
    xf = x.reshape(B, C, N)
    cm1 = jnp.einsum('oc,bcn->bon', w1, xf)          # (B, C, N)
    cm2 = jnp.einsum('oc,bcn->bon', w2, xf)
    cm3 = jnp.einsum('oc,bcn->bon', w3, xf)
    cm1_p = jnp.transpose(cm1, (0, 2, 1))            # (B, N, C)
    cm2_p = jnp.transpose(cm2, (0, 2, 1))            # (B, N, C)
    ctx = jnp.matmul(cm2_p, cm3)                     # (B, N, N)
    ctx = jax.nn.softmax(ctx, axis=-1)
    ctx = jnp.matmul(ctx, cm1_p)                     # (B, N, C)
    ctx = jnp.transpose(ctx, (0, 2, 1)).reshape(B, C, H, W)
    add_term = jnp.einsum('oc,bchw->bohw', w_add, ctx)
    return x + add_term


def _run_case(key, B, C, H, W, tol, *, att_scale=1.0, max_key_tile=2048):
    kx, k1, k2, k3, k4 = jax.random.split(key, 5)
    x = jax.random.normal(kx, (B, C, H, W), dtype=jnp.float32)
    # conv_mask1/2/3: kaiming(fan_in)-style normal init, shape (C_out, C_in).
    std = (2.0 / C) ** 0.5
    w1 = std * jax.random.normal(k1, (C, C), dtype=jnp.float32)
    # att_scale keeps the logit magnitude in a regime where the bf16-matmul
    # comparison against the f32 reference is meaningful (test-data choice).
    w2 = att_scale * std * jax.random.normal(k2, (C, C), dtype=jnp.float32)
    w3 = std * jax.random.normal(k3, (C, C), dtype=jnp.float32)
    # torch zero-inits channel_add (last_zero_init) which would make the
    # fusion term identically 0; use small random values to exercise the path.
    w_add = 0.01 * jax.random.normal(k4, (C, C), dtype=jnp.float32)

    out = jax.block_until_ready(
        nlblock2d_forward(x, w1, w2, w3, w_add, max_key_tile=max_key_tile))
    ref = nlblock2d_reference(x, w1, w2, w3, w_add)
    assert out.shape == (B, C, H, W)
    err = float(jnp.max(jnp.abs(out - ref)))
    assert jnp.allclose(out, ref, rtol=tol, atol=tol), err


if __name__ == "__main__":
    key = jax.random.PRNGKey(0)
    k0, k1, k2, k3 = jax.random.split(key, 4)
    # Lane-aligned spatial size (N=256): single query/key tile, f32 compute.
    _run_case(k0, B=2, C=8, H=16, W=16, tol=1e-2)
    # Non-aligned spatial size (N=100 -> padded to 128): key-mask path.
    _run_case(k1, B=2, C=8, H=10, W=10, tol=1e-2)
    # N=576 -> padded 640: multiple query tiles (kv-scratch reuse across q)
    # and the online-softmax key loop (5 key tiles) plus masking, f32 compute.
    _run_case(k2, B=1, C=8, H=24, W=24, tol=1e-2)
    # Production-ish channel count: bf16 MXU operands (+ bf16 exp on v6e/v7x),
    # multiple query/key tiles; looser tolerance for bf16 attention logits.
    _run_case(k3, B=1, C=128, H=24, W=24, tol=6e-2, att_scale=0.25)
    print("KERNEL_OK")
</pallas_src>

<mosaic_0001>
module attributes {stable_mosaic.version = 11 : i64} {
  func.func @_nlblock2d_kernel(%arg0: i32, %arg1: i32, %arg2: memref<1x8x256xf32, #tpu.memory_space<vmem>>, %arg3: memref<8x8xf32, #tpu.memory_space<vmem>>, %arg4: memref<16x8xf32, #tpu.memory_space<vmem>>, %arg5: memref<1x8x256xf32, #tpu.memory_space<vmem>>, %arg6: memref<16x256xf32, #tpu.memory_space<vmem>>) attributes {dimension_semantics = [#tpu.dimension_semantics<parallel>, #tpu.dimension_semantics<arbitrary>], iteration_bounds = array<i64: 2, 1>, scalar_prefetch = 0 : i64, scratch_operands = 1 : i64, tpu.core_type = #tpu.core_type<tc>, window_params = [{transform_indices = @transform_0, window_bounds = array<i64: 1, 8, 256>}, {pipeline_mode = #tpu.pipeline_mode<synchronous>, transform_indices = @transform_1, window_bounds = array<i64: 8, 8>}, {pipeline_mode = #tpu.pipeline_mode<synchronous>, transform_indices = @transform_2, window_bounds = array<i64: 16, 8>}, {transform_indices = @transform_3, window_bounds = array<i64: 1, 8, 256>}]} {
    %c0_i32 = arith.constant 0 : i32
    %0 = arith.cmpi eq, %arg1, %c0_i32 : i32
    %1 = arith.extui %0 : i1 to i32
    %c0_i32_0 = arith.constant 0 : i32
    %2 = arith.cmpi ne, %1, %c0_i32_0 : i32
    scf.if %2 {
      %c0_17 = arith.constant 0 : index
      %c0_18 = arith.constant 0 : index
      %40 = vector.load %arg4[%c0_17, %c0_18] : memref<16x8xf32, #tpu.memory_space<vmem>>, vector<16x8xf32>
      %c0_19 = arith.constant 0 : index
      %c0_20 = arith.constant 0 : index
      %c0_21 = arith.constant 0 : index
      %41 = vector.load %arg2[%c0_19, %c0_20, %c0_21] : memref<1x8x256xf32, #tpu.memory_space<vmem>>, vector<1x8x256xf32>
      %42 = vector.shape_cast %41 : vector<1x8x256xf32> to vector<8x256xf32>
      %cst_22 = arith.constant dense<0.000000e+00> : vector<16x256xf32>
      %43 = tpu.matmul %40, %42, %cst_22 {dimension_numbers = #tpu.dot_dimension_numbers<[1], [0], [0], [1], [0, 0, 1, 1], [], []>} : vector<16x8xf32>, vector<8x256xf32>, vector<16x256xf32> -> vector<16x256xf32>
      %c0_23 = arith.constant 0 : index
      %c0_24 = arith.constant 0 : index
      %44 = vector.load %arg6[%c0_23, %c0_24] : memref<16x256xf32, #tpu.memory_space<vmem>>, vector<16x256xf32>
      tpu.vector_store %arg6[%c0_23, %c0_24], %43 {strides = array<i32>} : memref<16x256xf32, #tpu.memory_space<vmem>>, vector<16x256xf32>,
    } else {
    }
    %c256_i32 = arith.constant 256 : i32
    %3 = arith.muli %arg1, %c256_i32 : i32
    %4 = tpu.assume_multiple %3, 256 : i32
    %c0 = arith.constant 0 : index
    %c0_1 = arith.constant 0 : index
    %5 = arith.index_cast %4 : i32 to index
    %6 = vector.load %arg2[%c0, %c0_1, %5] : memref<1x8x256xf32, #tpu.memory_space<vmem>>, vector<1x8x256xf32>
    %7 = vector.shape_cast %6 : vector<1x8x256xf32> to vector<8x256xf32>
    %c0_2 = arith.constant 0 : index
    %c0_3 = arith.constant 0 : index
    %8 = vector.load %arg3[%c0_2, %c0_3] : memref<8x8xf32, #tpu.memory_space<vmem>>, vector<8x8xf32>
    %cst = arith.constant dense<0.000000e+00> : vector<256x8xf32>
    %9 = tpu.matmul %7, %8, %cst {dimension_numbers = #tpu.dot_dimension_numbers<[0], [1], [1], [0], [0, 1, 1, 0], [], []>} : vector<8x256xf32>, vector<8x8xf32>, vector<256x8xf32> -> vector<256x8xf32>
    %cst_4 = arith.constant -1.000000e+30 : f32
    %10 = vector.broadcast %cst_4 : f32 to vector<256x1xf32>
    %cst_5 = arith.constant 0.000000e+00 : f32
    %11 = vector.broadcast %cst_5 : f32 to vector<256x1xf32>
    %cst_6 = arith.constant 0.000000e+00 : f32
    %12 = vector.broadcast %cst_6 : f32 to vector<256x8xf32>
    %c0_7 = arith.constant 0 : index
    %c0_8 = arith.constant 0 : index
    %13 = vector.load %arg6[%c0_7, %c0_8] : memref<16x256xf32, #tpu.memory_space<vmem>>, vector<8x256xf32>
    %c8 = arith.constant 8 : index
    %c0_9 = arith.constant 0 : index
    %14 = vector.load %arg6[%c8, %c0_9] : memref<16x256xf32, #tpu.memory_space<vmem>>, vector<8x256xf32>
    %cst_10 = arith.constant dense<0.000000e+00> : vector<256x256xf32>
    %15 = tpu.matmul %9, %13, %cst_10 {dimension_numbers = #tpu.dot_dimension_numbers<[1], [0], [0], [1], [0, 0, 1, 1], [], []>} : vector<256x8xf32>, vector<8x256xf32>, vector<256x256xf32> -> vector<256x256xf32>
    %cst_11 = arith.constant dense<0xFF800000> : vector<256xf32>
    %16 = vector.multi_reduction <maximumf>, %15, %cst_11 [1] : vector<256x256xf32> to vector<256xf32>
    %17 = vector.shape_cast %16 : vector<256xf32> to vector<256x1xf32>
    %18 = arith.maximumf %10, %17 : vector<256x1xf32>
    %19 = arith.subf %10, %18 : vector<256x1xf32>
    %20 = math.exp %19 : vector<256x1xf32>
    %21 = vector.broadcast %18 : vector<256x1xf32> to vector<256x256xf32>
    %22 = arith.subf %15, %21 : vector<256x256xf32>
    %23 = math.exp %22 : vector<256x256xf32>
    %24 = arith.mulf %20, %11 : vector<256x1xf32>
    %cst_12 = arith.constant dense<0.000000e+00> : vector<256xf32>
    %25 = vector.multi_reduction <add>, %23, %cst_12 [1] : vector<256x256xf32> to vector<256xf32>
    %26 = vector.shape_cast %25 : vector<256xf32> to vector<256x1xf32>
    %27 = arith.addf %24, %26 : vector<256x1xf32>
    %cst_13 = arith.constant dense<0.000000e+00> : vector<256x8xf32>
    %28 = tpu.matmul %23, %14, %cst_13 {dimension_numbers = #tpu.dot_dimension_numbers<[1], [1], [0], [0], [0, 0, 1, 0], [], []>} : vector<256x256xf32>, vector<8x256xf32>, vector<256x8xf32> -> vector<256x8xf32>
    %29 = vector.broadcast %20 : vector<256x1xf32> to vector<256x8xf32>
    %30 = arith.mulf %29, %12 : vector<256x8xf32>
    %31 = arith.addf %30, %28 : vector<256x8xf32>
    %32 = tpu.reciprocal %27 {approx = true} : vector<256x1xf32> -> vector<256x1xf32>
    %33 = vector.broadcast %32 : vector<256x1xf32> to vector<256x8xf32>
    %34 = arith.mulf %31, %33 : vector<256x8xf32>
    %35 = tpu.transpose %34, [1, 0] : vector<256x8xf32> -> vector<8x256xf32>
    %36 = arith.addf %7, %35 : vector<8x256xf32>
    %c0_14 = arith.constant 0 : index
    %c0_15 = arith.constant 0 : index
    %c0_16 = arith.constant 0 : index
    %37 = vector.load %arg5[%c0_14, %c0_15, %c0_16] : memref<1x8x256xf32, #tpu.memory_space<vmem>>, vector<1x8x256xf32>
    %38 = vector.shape_cast %37 : vector<1x8x256xf32> to vector<8x256xf32>
    %39 = vector.shape_cast %36 : vector<8x256xf32> to vector<1x8x256xf32>
    tpu.vector_store %arg5[%c0_14, %c0_15, %c0_16], %39 {strides = array<i32>} : memref<1x8x256xf32, #tpu.memory_space<vmem>>, vector<1x8x256xf32>,
    return
  }
  func.func @transform_0(%arg0: i32, %arg1: i32) -> (i32, i32, i32) {
    %c0_i32 = arith.constant 0 : i32
    %c0_i32_0 = arith.constant 0 : i32
    %c0_i32_1 = arith.constant 0 : i32
    return %arg0, %c0_i32, %c0_i32_0 : i32, i32, i32
  }
  func.func @transform_1(%arg0: i32, %arg1: i32) -> (i32, i32) {
    %c0_i32 = arith.constant 0 : i32
    %c0_i32_0 = arith.constant 0 : i32
    %c0_i32_1 = arith.constant 0 : i32
    return %c0_i32, %c0_i32_0 : i32, i32
  }
  func.func @transform_2(%arg0: i32, %arg1: i32) -> (i32, i32) {
    %c0_i32 = arith.constant 0 : i32
    %c0_i32_0 = arith.constant 0 : i32
    %c0_i32_1 = arith.constant 0 : i32
    return %c0_i32, %c0_i32_0 : i32, i32
  }
  func.func @transform_3(%arg0: i32, %arg1: i32) -> (i32, i32, i32) {
    %c0_i32 = arith.constant 0 : i32
    %c0_i32_0 = arith.constant 0 : i32
    return %arg0, %c0_i32, %arg1 : i32, i32, i32
  }
}

</mosaic_0001>

<llo_original>
// kernel: tpu_custom_call.1
$region0: #{tpu_custom_call.1}
  #allocation0 [shape = 'u32[]', space=smem, size = 0x4, offset = 0x4, fixed_abs, tag = 'smem constant byte address 0x4 - core index']
  #allocation1 [shape = 'u32[144,128]{1,0:T(1,128)}', space=vmem, size = 0x12000, scoped, tag = 'internal scratch']
  #allocation2 [shape = 'f32[16,256]{1,0:T(8,128)}', space=vmem, size = 0x4000, scoped, tag = 'scratch operand']
  %s0 = inlined_call_operand.hbm [shape: f32[2,8,256], index: 0, kind: input, shape index: {}]
  %s1 = inlined_call_operand.vmem [shape: f32[8,8], index: 1, kind: input, shape index: {}]
  %s2 = inlined_call_operand.vmem [shape: f32[16,8], index: 2, kind: input, shape index: {}]
  %s3 = inlined_call_operand.hbm [shape: f32[2,8,256], index: 3, kind: output, shape index: {}]
  %s4 = sld [smem:[#allocation0]]
  $region53: #{tpu_custom_call.1} parent=0
    _
  %s6 = ssub.s32 1, %s4
  %s7 = scalar_select 0, %s6, %s4
  $region1: #{tpu_custom_call.1} parent=0
    #allocation3 [shape = 'u8[16384]{0}', space=vmem, size = 0x4000, scoped, tag = 'input window, operand 0']
    #allocation4 [shape = 's32[2]{0}', space=sflag, size = 0x8, scoped, tag = 'scoped memory for tpu_custom_call.1']
    #allocation5 [shape = 's32[2]{0}', space=sflag, size = 0x8, scoped, tag = 'scoped memory for tpu_custom_call.1']
    #allocation6 [shape = 'u8[16384]{0}', space=vmem, size = 0x4000, scoped, tag = 'output window, operand 0']
    %8 = vsyncpa [#allocation4], 0
    %s9 = scalar_lea.sflag [#allocation4], 1
    %10 = vsyncpa %s9, 0
    %11 = vsyncpa [#allocation5], 0
    %s12 = scalar_lea.sflag [#allocation5], 1
    %13 = vsyncpa %s12, 0
    loop: start=0, step=1, limit=4
    $region2: #{tpu_custom_call.1} parent=1 // loop_pre_header
      _
    $region3: #{tpu_custom_call.1} parent=1 // loop_header
      %s15 = sphi 0, %s19
      %p16 = scmp.ge.s32.totalorder %s15, 4
      %s22 = sphi 0, %s34
      %s23 = sphi 0, %s30
      %s24 = sphi 0, %s22
      %s25 = sphi 0, %s23
      %s26 = sphi 0, %s24
      %s27 = sphi 0, %s25
      %s37 = sphi 0, %s39
      %s40 = sphi 0, %s37
      %s41 = sphi 0, %s40
      %s57 = sphi 0, %s41
      %s61 = sphi 0, %s61
      %s63 = sphi 0, %s61
      %s64 = sphi 0, %s63
      %s78 = sphi 0, %s64
      %s82 = sphi 0, %s82
      %s84 = sphi 0, %s82
      %s85 = sphi 0, %s84
      %s99 = sphi 0, %s85
      %s107 = sphi 0, %s109
      %s110 = sphi 0, %s107
      %s111 = sphi 0, %s110
      %s127 = sphi 0, %s111
    $region4: #{tpu_custom_call.1} parent=1 // loop_header_branch
      %18 = sbr.rel (%p16) target = $region8
    $region5: #{tpu_custom_call.1} parent=1 // loop_body
      %s20 = ssub.s32 %s15, 1
      %s21 = ssub.s32 %s15, 2
      %s28 = sadd.s32 1, %s23
      %p29 = scmp.ge.s32.totalorder %s28, 1
      %s30 = scalar_select %p29, 0, %s28
      %s31 = sadd.s32 1, %s22
      %s32 = scalar_select %p29, %s31, %s22
      %p33 = scmp.ge.s32.totalorder %s32, 2
      %s34 = scalar_select %p33, 0, %s32
      %s35 = ssub.s32 %s22, %s34
      %p36 = scmp.eq.s32.totalorder %s35, 0
      %s38 = sadd.s32 %s37, 1
      %s39 = scalar_select %p36, %s37, %s38
      %p42 = pneg %p36
      %p43 = scmp.eq.s32.totalorder %s15, 1
      %p44 = por %p42, %p43
      %p45 = scmp.ne.s32.totalorder %s37, %s40
      %p46 = scmp.eq.s32.totalorder %s15, 0
      %p47 = por %p45, %p46
      %p48 = scmp.ne.s32.totalorder %s37, %s40
      %p49 = scmp.eq.s32.totalorder %s20, 1
      %p50 = por %p48, %p49
      %p51 = scmp.ne.s32.totalorder %s40, %s41
      %p52 = scmp.eq.s32.totalorder %s20, 0
      %p53 = por %p51, %p52
      %p54 = scmp.ne.s32.totalorder %s40, %s41
      %p55 = scmp.eq.s32.totalorder %s21, 1
      %p56 = por %p54, %p55
      %p58 = scmp.ne.s32.totalorder %s41, %s57
      %p59 = scmp.eq.s32.totalorder %s21, 0
      %p60 = por %p58, %p59
      %s62 = sadd.s32 %s61, 1
      %p65 = scmp.eq.s32.totalorder %s15, 1
      %p66 = scmp.ne.s32.totalorder %s61, %s63
      %p67 = scmp.eq.s32.totalorder %s15, 0
      %p68 = por %p66, %p67
      %p69 = scmp.ne.s32.totalorder %s61, %s63
      %p70 = scmp.eq.s32.totalorder %s20, 1
      %p71 = por %p69, %p70
      %p72 = scmp.ne.s32.totalorder %s63, %s64
      %p73 = scmp.eq.s32.totalorder %s20, 0
      %p74 = por %p72, %p73
      %p75 = scmp.ne.s32.totalorder %s63, %s64
      %p76 = scmp.eq.s32.totalorder %s21, 1
      %p77 = por %p75, %p76
      %p79 = scmp.ne.s32.totalorder %s64, %s78
      %p80 = scmp.eq.s32.totalorder %s21, 0
      %p81 = por %p79, %p80
      %s83 = sadd.s32 %s82, 1
      %p86 = scmp.eq.s32.totalorder %s15, 1
      %p87 = scmp.ne.s32.totalorder %s82, %s84
      %p88 = scmp.eq.s32.totalorder %s15, 0
      %p89 = por %p87, %p88
      %p90 = scmp.ne.s32.totalorder %s82, %s84
      %p91 = scmp.eq.s32.totalorder %s20, 1
      %p92 = por %p90, %p91
      %p93 = scmp.ne.s32.totalorder %s84, %s85
      %p94 = scmp.eq.s32.totalorder %s20, 0
      %p95 = por %p93, %p94
      %p96 = scmp.ne.s32.totalorder %s84, %s85
      %p97 = scmp.eq.s32.totalorder %s21, 1
      %p98 = por %p96, %p97
      %p100 = scmp.ne.s32.totalorder %s85, %s99
      %p101 = scmp.eq.s32.totalorder %s21, 0
      %p102 = por %p100, %p101
      %s103 = ssub.s32 %s22, %s34
      %s104 = ssub.s32 %s23, %s30
      %s105 = sor.u32 %s103, %s104
      %p106 = scmp.eq.s32.totalorder %s105, 0
      %s108 = sadd.s32 %s107, 1
      %s109 = scalar_select %p106, %s107, %s108
      %p112 = pneg %p106
      %p113 = scmp.eq.s32.totalorder %s15, 1
      %p114 = por %p112, %p113
      %p115 = scmp.ne.s32.totalorder %s107, %s110
      %p116 = scmp.eq.s32.totalorder %s15, 0
      %p117 = por %p115, %p116
      %p118 = scmp.ne.s32.totalorder %s107, %s110
      %p119 = scmp.eq.s32.totalorder %s20, 1
      %p120 = por %p118, %p119
      %p121 = scmp.ne.s32.totalorder %s110, %s111
      %p122 = scmp.eq.s32.totalorder %s20, 0
      %p123 = por %p121, %p122
      %p124 = scmp.ne.s32.totalorder %s110, %s111
      %p125 = scmp.eq.s32.totalorder %s21, 1
      %p126 = por %p124, %p125
      %p128 = scmp.ne.s32.totalorder %s111, %s127
      %p129 = scmp.eq.s32.totalorder %s21, 0
      %p130 = por %p128, %p129
      %p131 = scmp.le.s32.totalorder 1, %s15
      %p132 = scmp.lt.s32.totalorder %s15, 3
      %p133 = pnand %p131, %p132
      %p134 = pneg %p133
      // Predicated region
      $region9: #{tpu_custom_call.1} parent=5 // pred_check
        _
      $region10: #{tpu_custom_call.1} parent=5 // pred_check_branch
        %136 = sbr.rel (%p133) target = $region12
      $region11: #{tpu_custom_call.1} parent=5 // pred_region
        %s137 = ssub.s32 %s15, 1
        // Predicated region
        $region13: #{tpu_custom_call.1} parent=11 // pred_check
          %p138 = pneg %p74
        $region14: #{tpu_custom_call.1} parent=11 // pred_check_branch
          %140 = sbr.rel (%p138) target = $region16
        $region15: #{tpu_custom_call.1} parent=11 // pred_region
          _
        $region16: #{tpu_custom_call.1} parent=11 // pred_fallthru
          _
        // Predicated region
        $region17: #{tpu_custom_call.1} parent=11 // pred_check
          %p141 = pneg %p95
        $region18: #{tpu_custom_call.1} parent=11 // pred_check_branch
          %143 = sbr.rel (%p141) target = $region20
        $region19: #{tpu_custom_call.1} parent=11 // pred_region
          _
        $region20: #{tpu_custom_call.1} parent=11 // pred_fallthru
          _
      $region12: #{tpu_custom_call.1} parent=5 // pred_fallthru
        _
      %p144 = scmp.lt.s32.totalorder %s15, 2
      // Predicated region
      $region21: #{tpu_custom_call.1} parent=5 // pred_check
        %p145 = pneg %p144
      $region22: #{tpu_custom_call.1} parent=5 // pred_check_branch
        %147 = sbr.rel (%p145) target = $region24
      $region23: #{tpu_custom_call.1} parent=5 // pred_region
        // Predicated region
        $region25: #{tpu_custom_call.1} parent=23 // pred_check
          %p148 = pneg %p47
        $region26: #{tpu_custom_call.1} parent=23 // pred_check_branch
          %150 = sbr.rel (%p148) target = $region28
        $region27: #{tpu_custom_call.1} parent=23 // pred_region
          %s151 = sand.u32 %s37, 1
          %s152 = scalar_lea.sflag [#allocation4], %s151
          %s153 = sand.u32 %s37, 1
          %s154 = smul.addr %s153, 16
          %s155 = scalar_lea.vmem [#allocation3], %s154
          %s157 = ssub.s32 256, 256
          %158 = vsyncadd %s152, %s157
          %s159 = smul.addr %s22, 2
          %s160 = smul.addr %s159, 128
          %s161 = scalar_lea.hbm %s0, %s160
          %s163 = sshll.u32 %s155, 4
          %s164 = int_to_ptr.vmem [resolvable:$true] %s163
          %166 = dma.hbm_to_vmem [thread:$0]  %s161, 256, %s164, %s152
        $region28: #{tpu_custom_call.1} parent=23 // pred_fallthru
          _
      $region24: #{tpu_custom_call.1} parent=5 // pred_fallthru
        _
      %p167 = scmp.le.s32.totalorder 1, %s15
      %p168 = scmp.lt.s32.totalorder %s15, 3
      %p169 = pnand %p167, %p168
      %p170 = pneg %p169
      // Predicated region
      $region29: #{tpu_custom_call.1} parent=5 // pred_check
        _
      $region30: #{tpu_custom_call.1} parent=5 // pred_check_branch
        %172 = sbr.rel (%p169) target = $region32
      $region31: #{tpu_custom_call.1} parent=5 // pred_region
        %s173 = ssub.s32 %s15, 1
        %s174 = sand.u32 %s40, 1
        %s175 = scalar_lea.sflag [#allocation4], %s174
        %s176 = sand.u32 %s40, 1
        %s177 = smul.addr %s176, 16
        %s178 = scalar_lea.vmem [#allocation3], %s177
        // Predicated region
        $region33: #{tpu_custom_call.1} parent=31 // pred_check
          %p179 = pneg %p53
        $region34: #{tpu_custom_call.1} parent=31 // pred_check_branch
          %181 = sbr.rel (%p179) target = $region36
        $region35: #{tpu_custom_call.1} parent=31 // pred_region
          %182 = dma.done %s175, 256
        $region36: #{tpu_custom_call.1} parent=31 // pred_fallthru
          _
        %s183 = sand.u32 %s40, 1
        %s184 = scalar_lea.sflag [#allocation4], %s183
        %s185 = sand.u32 %s40, 1
        %s186 = smul.addr %s185, 16
        %s187 = scalar_lea.vmem [#allocation3], %s186
        %p188 = pneg %p53
        %p189 = pneg %p50
        %p190 = pneg %p74
        %p191 = pneg %p71
        %p192 = pneg %p95
        %p193 = pneg %p92
        %p194 = pneg %p123
        %p195 = pneg %p120
        %s196 = sand.u32 %s110, 1
        %s197 = scalar_lea.sflag [#allocation5], %s196
        %s198 = sand.u32 %s110, 1
        %s199 = smul.addr %s198, 16
        %s200 = scalar_lea.vmem [#allocation6], %s199
        %s201 = smul.u32 2, %s25
        %p202 = scmp.eq.s32.totalorder %s25, 0
        // Predicated region
        $region37: #{tpu_custom_call.1} parent=31 // pred_check
          %p203 = pneg %p202
        $region38: #{tpu_custom_call.1} parent=31 // pred_check_branch
          %205 = sbr.rel (%p203) target = $region40
        $region39: #{tpu_custom_call.1} parent=31 // pred_region
          %v206 = vld [vmem:[%s2] sm:$0xff]
          %v207 = vld [vmem:[%s2 + $0x8] sm:$0xff]
          %v208 = vld [vmem:[%s178] sm:$0xff]
          %v209 = vld [vmem:[%s178 + $0x8] sm:$0xff]
          %vm210 = vcmask 64512
          %v212 = vsel %vm210, %v206, 0
          %v215 = vsel %vm210, %v207, 0
          %217 = vmatprep.subr.mxu0 %v209
          %218 = vmatpush1.msra.mxu0 %v208
          %219 = vmatprep.subr.mxu0 0.0
          %220 = vmatpush1.msra.mxu0 0.0
          %221 = vmatprep.subr.mxu0 0.0
          %222 = vmatpush1.msra.mxu0 0.0
          %223 = vmatprep.subr.mxu0 0.0
          %224 = vmatpush1.msra.mxu0 0.0
          %225 = vmatprep.subr.mxu0 0.0
          %226 = vmatpush1.msra.mxu0 0.0
          %227 = vmatprep.subr.mxu0 0.0
          %228 = vmatpush1.msra.mxu0 0.0
          %229 = vmatprep.subr.mxu0 0.0
          %230 = vmatpush1.msra.mxu0 0.0
          %231 = vmatprep.subr.mxu0 0.0
          %232 = vmatpush1.msra.mxu0 0.0
          %233 = vmatprep.subr.mxu0 0.0
          %234 = vmatpush1.msra.mxu0 0.0
          %235 = vmatprep.subr.mxu0 0.0
          %236 = vmatpush1.msra.mxu0 0.0
          %237 = vmatprep.subr.mxu0 0.0
          %238 = vmatpush1.msra.mxu0 0.0
          %239 = vmatprep.subr.mxu0 0.0
          %240 = vmatpush1.msra.mxu0 0.0
          %241 = vmatprep.subr.mxu0 0.0
          %242 = vmatpush1.msra.mxu0 0.0
          %243 = vmatprep.subr.mxu0 0.0
          %244 = vmatpush1.msra.mxu0 0.0
          %245 = vmatprep.subr.mxu0 0.0
          %246 = vmatpush1.msra.mxu0 0.0
          %247 = vmatprep.subr.mxu0 0.0
          %248 = vmatpush1.msra.mxu0 0.0
          %249 = vmatprep.subr.mxu0 0.0
          %250 = vmatpush1.msra.mxu0 0.0
          %251 = vmatprep.subr.mxu0 0.0
          %252 = vmatpush1.msra.mxu0 0.0
          %253 = vmatprep.subr.mxu0 0.0
          %254 = vmatpush1.msra.mxu0 0.0
          %255 = vmatprep.subr.mxu0 0.0
          %256 = vmatpush1.msra.mxu0 0.0
          %257 = vmatprep.subr.mxu0 0.0
          %258 = vmatpush1.msra.mxu0 0.0
          %259 = vmatprep.subr.mxu0 0.0
          %260 = vmatpush1.msra.mxu0 0.0
          %261 = vmatprep.subr.mxu0 0.0
          %262 = vmatpush1.msra.mxu0 0.0
          %263 = vmatprep.subr.mxu0 0.0
          %264 = vmatpush1.msra.mxu0 0.0
          %265 = vmatprep.subr.mxu0 0.0
          %266 = vmatpush1.msra.mxu0 0.0
          %267 = vmatprep.subr.mxu0 0.0
          %268 = vmatpush1.msra.mxu0 0.0
          %269 = vmatprep.subr.mxu0 0.0
          %270 = vmatpush1.msra.mxu0 0.0
          %271 = vmatprep.subr.mxu0 0.0
          %272 = vmatpush1.msra.mxu0 0.0
          %273 = vmatprep.subr.mxu0 0.0
          %274 = vmatpush1.msra.mxu0 0.0
          %275 = vmatprep.subr.mxu0 0.0
          %276 = vmatpush1.msra.mxu0 0.0
          %277 = vmatprep.subr.mxu0 0.0
          %278 = vmatpush1.msra.mxu0 0.0
          %279 = vmatprep.subr.mxu0 0.0
          %280 = vmatpush1.msra.mxu0 0.0
          %281 = vmatprep.mubr.f32.mxu0 0.0
          %282 = vmatmul.mubr.f32.gmra.mrb[0].mxu0 %v212
          %v283 = vpop.f32.mrb[0].mxu0
          %v284 = vadd.f32 0.0, %v283
          %v285 = vpop.f32.mrb[0].mxu0
          %v286 = vadd.f32 0.0, %v285
          %287 = vmatprep.mubr.f32.mxu0 0.0
          %288 = vmatmul.mubr.f32.gmra.mrb[0].mxu0 %v215
          %v289 = vpop.f32.mrb[0].mxu0
          %v290 = vadd.f32 0.0, %v289
          %v291 = vpop.f32.mrb[0].mxu0
          %v292 = vadd.f32 0.0, %v291
          %293 = vdwg.mxu0
          %294 = vst [vmem:[#allocation2] sm:$0xff] %v284
          %295 = vst [vmem:[#allocation2 + $0x8] sm:$0xff] %v286
          %296 = vst [vmem:[#allocation2 + $0x10] sm:$0xff] %v290
          %297 = vst [vmem:[#allocation2 + $0x18] sm:$0xff] %v292
        $region40: #{tpu_custom_call.1} parent=31 // pred_fallthru
          _
        %s298 = smul.u32 %s25, 256
        %s299 = sshra.s32 %s298, 7
        %s300 = sand.u32 %s298, 127
        %s301 = smul.addr %s299, 8
        %s302 = scalar_lea.vmem %s178, %s301 [#allocation3]
        %v303 = vld [vmem:[%s302] sm:$0xff]
        %v304 = vld [vmem:[%s302 + $0x8] sm:$0xff]
        %v305 = vld [vmem:[%s1] sm:$0xff]
        %306 = vxpose.xlu0.b32.start [1/16] %v303, 128
        %307 = vxpose.xlu0.b32.cont [2/16] 0.0, 128
        %308 = vxpose.xlu0.b32.cont [3/16] 0.0, 128
        %309 = vxpose.xlu0.b32.cont [4/16] 0.0, 128
        %310 = vxpose.xlu0.b32.cont [5/16] 0.0, 128
        %311 = vxpose.xlu0.b32.cont [6/16] 0.0, 128
        %312 = vxpose.xlu0.b32.cont [7/16] 0.0, 128
        %313 = vxpose.xlu0.b32.cont [8/16] 0.0, 128
        %314 = vxpose.xlu0.b32.cont [9/16] 0.0, 128
        %315 = vxpose.xlu0.b32.cont [10/16] 0.0, 128
        %316 = vxpose.xlu0.b32.cont [11/16] 0.0, 128
        %317 = vxpose.xlu0.b32.cont [12/16] 0.0, 128
        %318 = vxpose.xlu0.b32.cont [13/16] 0.0, 128
        %319 = vxpose.xlu0.b32.cont [14/16] 0.0, 128
        %320 = vxpose.xlu0.b32.cont [15/16] 0.0, 128
        %321 = vxpose.xlu0.b32.end [16/16] 0.0, 128
        %v322 = vpop.trf.xlu0
        %v323 = vpop.trf.xlu0
        %v324 = vpop.trf.xlu0
        %v325 = vpop.trf.xlu0
        %v326 = vpop.trf.xlu0
        %v327 = vpop.trf.xlu0
        %v328 = vpop.trf.xlu0
        %v329 = vpop.trf.xlu0
        %v330 = vpop.trf.xlu0
        %v331 = vpop.trf.xlu0
        %v332 = vpop.trf.xlu0
        %v333 = vpop.trf.xlu0
        %v334 = vpop.trf.xlu0
        %v335 = vpop.trf.xlu0
        %v336 = vpop.trf.xlu0
        %v337 = vpop.trf.xlu0
        %338 = vxpose.xlu0.b32.start [1/16] %v304, 128
        %339 = vxpose.xlu0.b32.cont [2/16] 0.0, 128
        %340 = vxpose.xlu0.b32.cont [3/16] 0.0, 128
        %341 = vxpose.xlu0.b32.cont [4/16] 0.0, 128
        %342 = vxpose.xlu0.b32.cont [5/16] 0.0, 128
        %343 = vxpose.xlu0.b32.cont [6/16] 0.0, 128
        %344 = vxpose.xlu0.b32.cont [7/16] 0.0, 128
        %345 = vxpose.xlu0.b32.cont [8/16] 0.0, 128
        %346 = vxpose.xlu0.b32.cont [9/16] 0.0, 128
        %347 = vxpose.xlu0.b32.cont [10/16] 0.0, 128
        %348 = vxpose.xlu0.b32.cont [11/16] 0.0, 128
        %349 = vxpose.xlu0.b32.cont [12/16] 0.0, 128
        %350 = vxpose.xlu0.b32.cont [13/16] 0.0, 128
        %351 = vxpose.xlu0.b32.cont [14/16] 0.0, 128
        %352 = vxpose.xlu0.b32.cont [15/16] 0.0, 128
        %353 = vxpose.xlu0.b32.end [16/16] 0.0, 128
        %v354 = vpop.trf.xlu0
        %v355 = vpop.trf.xlu0
        %v356 = vpop.trf.xlu0
        %v357 = vpop.trf.xlu0
        %v358 = vpop.trf.xlu0
        %v359 = vpop.trf.xlu0
        %v360 = vpop.trf.xlu0
        %v361 = vpop.trf.xlu0
        %v362 = vpop.trf.xlu0
        %v363 = vpop.trf.xlu0
        %v364 = vpop.trf.xlu0
        %v365 = vpop.trf.xlu0
        %v366 = vpop.trf.xlu0
        %v367 = vpop.trf.xlu0
        %v368 = vpop.trf.xlu0
        %v369 = vpop.trf.xlu0
        %vm370 = vcmask 64512
        %v372 = vsel %vm370, %v322, 0
        %v375 = vsel %vm370, %v323, 0
        %v378 = vsel %vm370, %v324, 0
        %v381 = vsel %vm370, %v325, 0
        %v384 = vsel %vm370, %v326, 0
        %v387 = vsel %vm370, %v327, 0
        %v390 = vsel %vm370, %v328, 0
        %v393 = vsel %vm370, %v329, 0
        %v396 = vsel %vm370, %v330, 0
        %v399 = vsel %vm370, %v331, 0
        %v402 = vsel %vm370, %v332, 0
        %v405 = vsel %vm370, %v333, 0
        %v408 = vsel %vm370, %v334, 0
        %v411 = vsel %vm370, %v335, 0
        %v414 = vsel %vm370, %v336, 0
        %v417 = vsel %vm370, %v337, 0
        %v420 = vsel %vm370, %v354, 0
        %v423 = vsel %vm370, %v355, 0
        %v426 = vsel %vm370, %v356, 0
        %v429 = vsel %vm370, %v357, 0
        %v432 = vsel %vm370, %v358, 0
        %v435 = vsel %vm370, %v359, 0
        %v438 = vsel %vm370, %v360, 0
        %v441 = vsel %vm370, %v361, 0
        %v444 = vsel %vm370, %v362, 0
        %v447 = vsel %vm370, %v363, 0
        %v450 = vsel %vm370, %v364, 0
        %v453 = vsel %vm370, %v365, 0
        %v456 = vsel %vm370, %v366, 0
        %v459 = vsel %vm370, %v367, 0
        %v462 = vsel %vm370, %v368, 0
        %v465 = vsel %vm370, %v369, 0
        %v468 = vsel %vm370, %v305, 0
        %470 = vmatprep.subr.mxu0 0.0
        %471 = vmatpush1.xpose.msra.mxu0 %v468
        %472 = vmatprep.subr.mxu0 0.0
        %473 = vmatpush1.xpose.msra.mxu0 0.0
        %474 = vmatprep.subr.mxu0 0.0
        %475 = vmatpush1.xpose.msra.mxu0 0.0
        %476 = vmatprep.subr.mxu0 0.0
        %477 = vmatpush1.xpose.msra.mxu0 0.0
        %478 = vmatprep.subr.mxu0 0.0
        %479 = vmatpush1.xpose.msra.mxu0 0.0
        %480 = vmatprep.subr.mxu0 0.0
        %481 = vmatpush1.xpose.msra.mxu0 0.0
        %482 = vmatprep.subr.mxu0 0.0
        %483 = vmatpush1.xpose.msra.mxu0 0.0
        %484 = vmatprep.subr.mxu0 0.0
        %485 = vmatpush1.xpose.msra.mxu0 0.0
        %486 = vmatprep.subr.mxu0 0.0
        %487 = vmatpush1.xpose.msra.mxu0 0.0
        %488 = vmatprep.subr.mxu0 0.0
        %489 = vmatpush1.xpose.msra.mxu0 0.0
        %490 = vmatprep.subr.mxu0 0.0
        %491 = vmatpush1.xpose.msra.mxu0 0.0
        %492 = vmatprep.subr.mxu0 0.0
        %493 = vmatpush1.xpose.msra.mxu0 0.0
        %494 = vmatprep.subr.mxu0 0.0
        %495 = vmatpush1.xpose.msra.mxu0 0.0
        %496 = vmatprep.subr.mxu0 0.0
        %497 = vmatpush1.xpose.msra.mxu0 0.0
        %498 = vmatprep.subr.mxu0 0.0
        %499 = vmatpush1.xpose.msra.mxu0 0.0
        %500 = vmatprep.subr.mxu0 0.0
        %501 = vmatpush1.xpose.msra.mxu0 0.0
        %502 = vmatprep.subr.mxu0 0.0
        %503 = vmatpush1.xpose.msra.mxu0 0.0
        %504 = vmatprep.subr.mxu0 0.0
        %505 = vmatpush1.xpose.msra.mxu0 0.0
        %506 = vmatprep.subr.mxu0 0.0
        %507 = vmatpush1.xpose.msra.mxu0 0.0
        %508 = vmatprep.subr.mxu0 0.0
        %509 = vmatpush1.xpose.msra.mxu0 0.0
        %510 = vmatprep.subr.mxu0 0.0
        %511 = vmatpush1.xpose.msra.mxu0 0.0
        %512 = vmatprep.subr.mxu0 0.0
        %513 = vmatpush1.xpose.msra.mxu0 0.0
        %514 = vmatprep.subr.mxu0 0.0
        %515 = vmatpush1.xpose.msra.mxu0 0.0
        %516 = vmatprep.subr.mxu0 0.0
        %517 = vmatpush1.xpose.msra.mxu0 0.0
        %518 = vmatprep.subr.mxu0 0.0
        %519 = vmatpush1.xpose.msra.mxu0 0.0
        %520 = vmatprep.subr.mxu0 0.0
        %521 = vmatpush1.xpose.msra.mxu0 0.0
        %522 = vmatprep.subr.mxu0 0.0
        %523 = vmatpush1.xpose.msra.mxu0 0.0
        %524 = vmatprep.subr.mxu0 0.0
        %525 = vmatpush1.xpose.msra.mxu0 0.0
        %526 = vmatprep.subr.mxu0 0.0
        %527 = vmatpush1.xpose.msra.mxu0 0.0
        %528 = vmatprep.subr.mxu0 0.0
        %529 = vmatpush1.xpose.msra.mxu0 0.0
        %530 = vmatprep.subr.mxu0 0.0
        %531 = vmatpush1.xpose.msra.mxu0 0.0
        %532 = vmatprep.subr.mxu0 0.0
        %533 = vmatpush1.xpose.msra.mxu0 0.0
        %534 = vmatprep.mubr.f32.mxu0 0.0
        %535 = vmatmul.mubr.f32.gmra.mrb[0].mxu0 %v372
        %v536 = vpop.f32.mrb[0].mxu0
        %v537 = vadd.f32 0.0, %v536
        %v538 = vpop.f32.mrb[0].mxu0
        %539 = vmatprep.mubr.f32.mxu0 0.0
        %540 = vmatmul.mubr.f32.gmra.mrb[0].mxu0 %v375
        %v541 = vpop.f32.mrb[0].mxu0
        %v542 = vadd.f32 0.0, %v541
        %v543 = vpop.f32.mrb[0].mxu0
        %544 = vmatprep.mubr.f32.mxu0 0.0
        %545 = vmatmul.mubr.f32.gmra.mrb[0].mxu0 %v378
        %v546 = vpop.f32.mrb[0].mxu0
        %v547 = vadd.f32 0.0, %v546
        %v548 = vpop.f32.mrb[0].mxu0
        %549 = vmatprep.mubr.f32.mxu0 0.0
        %550 = vmatmul.mubr.f32.gmra.mrb[0].mxu0 %v381
        %v551 = vpop.f32.mrb[0].mxu0
        %v552 = vadd.f32 0.0, %v551
        %v553 = vpop.f32.mrb[0].mxu0
        %554 = vmatprep.mubr.f32.mxu0 0.0
        %555 = vmatmul.mubr.f32.gmra.mrb[0].mxu0 %v384
        %v556 = vpop.f32.mrb[0].mxu0
        %v557 = vadd.f32 0.0, %v556
        %v558 = vpop.f32.mrb[0].mxu0
        %559 = vmatprep.mubr.f32.mxu0 0.0
        %560 = vmatmul.mubr.f32.gmra.mrb[0].mxu0 %v387
        %v561 = vpop.f32.mrb[0].mxu0
        %v562 = vadd.f32 0.0, %v561
        %v563 = vpop.f32.mrb[0].mxu0
        %564 = vmatprep.mubr.f32.mxu0 0.0
        %565 = vmatmul.mubr.f32.gmra.mrb[0].mxu0 %v390
        %v566 = vpop.f32.mrb[0].mxu0
        %v567 = vadd.f32 0.0, %v566
        %v568 = vpop.f32.mrb[0].mxu0
        %569 = vmatprep.mubr.f32.mxu0 0.0
        %570 = vmatmul.mubr.f32.gmra.mrb[0].mxu0 %v393
        %v571 = vpop.f32.mrb[0].mxu0
        %v572 = vadd.f32 0.0, %v571
        %v573 = vpop.f32.mrb[0].mxu0
        %574 = vmatprep.mubr.f32.mxu0 0.0
        %575 = vmatmul.mubr.f32.gmra.mrb[0].mxu0 %v396
        %v576 = vpop.f32.mrb[0].mxu0
        %v577 = vadd.f32 0.0, %v576
        %v578 = vpop.f32.mrb[0].mxu0
        %579 = vmatprep.mubr.f32.mxu0 0.0
        %580 = vmatmul.mubr.f32.gmra.mrb[0].mxu0 %v399
        %v581 = vpop.f32.mrb[0].mxu0
        %v582 = vadd.f32 0.0, %v581
        %v583 = vpop.f32.mrb[0].mxu0
        %584 = vmatprep.mubr.f32.mxu0 0.0
        %585 = vmatmul.mubr.f32.gmra.mrb[0].mxu0 %v402
        %v586 = vpop.f32.mrb[0].mxu0
        %v587 = vadd.f32 0.0, %v586
        %v588 = vpop.f32.mrb[0].mxu0
        %589 = vmatprep.mubr.f32.mxu0 0.0
        %590 = vmatmul.mubr.f32.gmra.mrb[0].mxu0 %v405
        %v591 = vpop.f32.mrb[0].mxu0
        %v592 = vadd.f32 0.0, %v591
        %v593 = vpop.f32.mrb[0].mxu0
        %594 = vmatprep.mubr.f32.mxu0 0.0
        %595 = vmatmul.mubr.f32.gmra.mrb[0].mxu0 %v408
        %v596 = vpop.f32.mrb[0].mxu0
        %v597 = vadd.f32 0.0, %v596
        %v598 = vpop.f32.mrb[0].mxu0
        %599 = vmatprep.mubr.f32.mxu0 0.0
        %600 = vmatmul.mubr.f32.gmra.mrb[0].mxu0 %v411
        %v601 = vpop.f32.mrb[0].mxu0
        %v602 = vadd.f32 0.0, %v601
        %v603 = vpop.f32.mrb[0].mxu0
        %604 = vmatprep.mubr.f32.mxu0 0.0
        %605 = vmatmul.mubr.f32.gmra.mrb[0].mxu0 %v414
        %v606 = vpop.f32.mrb[0].mxu0
        %v607 = vadd.f32 0.0, %v606
        %v608 = vpop.f32.mrb[0].mxu0
        %609 = vmatprep.mubr.f32.mxu0 0.0
        %610 = vmatmul.mubr.f32.gmra.mrb[0].mxu0 %v417
        %v611 = vpop.f32.mrb[0].mxu0
        %v612 = vadd.f32 0.0, %v611
        %v613 = vpop.f32.mrb[0].mxu0
        %614 = vmatprep.mubr.f32.mxu0 0.0
        %615 = vmatmul.mubr.f32.gmra.mrb[0].mxu0 %v420
        %v616 = vpop.f32.mrb[0].mxu0
        %v617 = vadd.f32 0.0, %v616
        %v618 = vpop.f32.mrb[0].mxu0
        %619 = vmatprep.mubr.f32.mxu0 0.0
        %620 = vmatmul.mubr.f32.gmra.mrb[0].mxu0 %v423
        %v621 = vpop.f32.mrb[0].mxu0
        %v622 = vadd.f32 0.0, %v621
        %v623 = vpop.f32.mrb[0].mxu0
        %624 = vmatprep.mubr.f32.mxu0 0.0
        %625 = vmatmul.mubr.f32.gmra.mrb[0].mxu0 %v426
        %v626 = vpop.f32.mrb[0].mxu0
        %v627 = vadd.f32 0.0, %v626
        %v628 = vpop.f32.mrb[0].mxu0
        %629 = vmatprep.mubr.f32.mxu0 0.0
        %630 = vmatmul.mubr.f32.gmra.mrb[0].mxu0 %v429
        %v631 = vpop.f32.mrb[0].mxu0
        %v632 = vadd.f32 0.0, %v631
        %v633 = vpop.f32.mrb[0].mxu0
        %634 = vmatprep.mubr.f32.mxu0 0.0
        %635 = vmatmul.mubr.f32.gmra.mrb[0].mxu0 %v432
        %v636 = vpop.f32.mrb[0].mxu0
        %v637 = vadd.f32 0.0, %v636
        %v638 = vpop.f32.mrb[0].mxu0
        %639 = vmatprep.mubr.f32.mxu0 0.0
        %640 = vmatmul.mubr.f32.gmra.mrb[0].mxu0 %v435
        %v641 = vpop.f32.mrb[0].mxu0
        %v642 = vadd.f32 0.0, %v641
        %v643 = vpop.f32.mrb[0].mxu0
        %644 = vmatprep.mubr.f32.mxu0 0.0
        %645 = vmatmul.mubr.f32.gmra.mrb[0].mxu0 %v438
        %v646 = vpop.f32.mrb[0].mxu0
        %v647 = vadd.f32 0.0, %v646
        %v648 = vpop.f32.mrb[0].mxu0
        %649 = vmatprep.mubr.f32.mxu0 0.0
        %650 = vmatmul.mubr.f32.gmra.mrb[0].mxu0 %v441
        %v651 = vpop.f32.mrb[0].mxu0
        %v652 = vadd.f32 0.0, %v651
        %v653 = vpop.f32.mrb[0].mxu0
        %654 = vmatprep.mubr.f32.mxu0 0.0
        %655 = vmatmul.mubr.f32.gmra.mrb[0].mxu0 %v444
        %v656 = vpop.f32.mrb[0].mxu0
        %v657 = vadd.f32 0.0, %v656
        %v658 = vpop.f32.mrb[0].mxu0
        %659 = vmatprep.mubr.f32.mxu0 0.0
        %660 = vmatmul.mubr.f32.gmra.mrb[0].mxu0 %v447
        %v661 = vpop.f32.mrb[0].mxu0
        %v662 = vadd.f32 0.0, %v661
        %v663 = vpop.f32.mrb[0].mxu0
        %664 = vmatprep.mubr.f32.mxu0 0.0
        %665 = vmatmul.mubr.f32.gmra.mrb[0].mxu0 %v450
        %v666 = vpop.f32.mrb[0].mxu0
        %v667 = vadd.f32 0.0, %v666
        %v668 = vpop.f32.mrb[0].mxu0
        %669 = vmatprep.mubr.f32.mxu0 0.0
        %670 = vmatmul.mubr.f32.gmra.mrb[0].mxu0 %v453
        %v671 = vpop.f32.mrb[0].mxu0
        %v672 = vadd.f32 0.0, %v671
        %v673 = vpop.f32.mrb[0].mxu0
        %674 = vmatprep.mubr.f32.mxu0 0.0
        %675 = vmatmul.mubr.f32.gmra.mrb[0].mxu0 %v456
        %v676 = vpop.f32.mrb[0].mxu0
        %v677 = vadd.f32 0.0, %v676
        %v678 = vpop.f32.mrb[0].mxu0
        %679 = vmatprep.mubr.f32.mxu0 0.0
        %680 = vmatmul.mubr.f32.gmra.mrb[0].mxu0 %v459
        %v681 = vpop.f32.mrb[0].mxu0
        %v682 = vadd.f32 0.0, %v681
        %v683 = vpop.f32.mrb[0].mxu0
        %684 = vmatprep.mubr.f32.mxu0 0.0
        %685 = vmatmul.mubr.f32.gmra.mrb[0].mxu0 %v462
        %v686 = vpop.f32.mrb[0].mxu0
        %v687 = vadd.f32 0.0, %v686
        %v688 = vpop.f32.mrb[0].mxu0
        %689 = vmatprep.mubr.f32.mxu0 0.0
        %690 = vmatmul.mubr.f32.gmra.mrb[0].mxu0 %v465
        %v691 = vpop.f32.mrb[0].mxu0
        %v692 = vadd.f32 0.0, %v691
        %v693 = vpop.f32.mrb[0].mxu0
        %694 = vdwg.mxu0
        %v695 = vld [vmem:[#allocation2] sm:$0xff]
        %v696 = vld [vmem:[#allocation2 + $0x8] sm:$0xff]
        %v697 = vld [vmem:[#allocation2 + $0x10] sm:$0xff]
        %v698 = vld [vmem:[#allocation2 + $0x18] sm:$0xff]
        %v700 = vsel %vm370, %v537, 0
        %v703 = vsel %vm370, %v542, 0
        %v706 = vsel %vm370, %v547, 0
        %v709 = vsel %vm370, %v552, 0
        %v712 = vsel %vm370, %v557, 0
        %v715 = vsel %vm370, %v562, 0
        %v718 = vsel %vm370, %v567, 0
        %v721 = vsel %vm370, %v572, 0
        %v724 = vsel %vm370, %v577, 0
        %v727 = vsel %vm370, %v582, 0
        %v730 = vsel %vm370, %v587, 0
        %v733 = vsel %vm370, %v592, 0
        %v736 = vsel %vm370, %v597, 0
        %v739 = vsel %vm370, %v602, 0
        %v742 = vsel %vm370, %v607, 0
        %v745 = vsel %vm370, %v612, 0
        %v748 = vsel %vm370, %v617, 0
        %v751 = vsel %vm370, %v622, 0
        %v754 = vsel %vm370, %v627, 0
        %v757 = vsel %vm370, %v632, 0
        %v760 = vsel %vm370, %v637, 0
        %v763 = vsel %vm370, %v642, 0
        %v766 = vsel %vm370, %v647, 0
        %v769 = vsel %vm370, %v652, 0
        %v772 = vsel %vm370, %v657, 0
        %v775 = vsel %vm370, %v662, 0
        %v778 = vsel %vm370, %v667, 0
        %v781 = vsel %vm370, %v672, 0
        %v784 = vsel %vm370, %v677, 0
        %v787 = vsel %vm370, %v682, 0
        %v790 = vsel %vm370, %v687, 0
        %v793 = vsel %vm370, %v692, 0
        %795 = vmatprep.subr.mxu0 %v696
        %796 = vmatpush1.msra.mxu0 %v695
        %797 = vmatprep.subr.mxu0 0.0
        %798 = vmatpush1.msra.mxu0 0.0
        %799 = vmatprep.subr.mxu0 0.0
        %800 = vmatpush1.msra.mxu0 0.0
        %801 = vmatprep.subr.mxu0 0.0
        %802 = vmatpush1.msra.mxu0 0.0
        %803 = vmatprep.subr.mxu0 0.0
        %804 = vmatpush1.msra.mxu0 0.0
        %805 = vmatprep.subr.mxu0 0.0
        %806 = vmatpush1.msra.mxu0 0.0
        %807 = vmatprep.subr.mxu0 0.0
        %808 = vmatpush1.msra.mxu0 0.0
        %809 = vmatprep.subr.mxu0 0.0
        %810 = vmatpush1.msra.mxu0 0.0
        %811 = vmatprep.subr.mxu0 0.0
        %812 = vmatpush1.msra.mxu0 0.0
        %813 = vmatprep.subr.mxu0 0.0
        %814 = vmatpush1.msra.mxu0 0.0
        %815 = vmatprep.subr.mxu0 0.0
        %816 = vmatpush1.msra.mxu0 0.0
        %817 = vmatprep.subr.mxu0 0.0
        %818 = vmatpush1.msra.mxu0 0.0
        %819 = vmatprep.subr.mxu0 0.0
        %820 = vmatpush1.msra.mxu0 0.0
        %821 = vmatprep.subr.mxu0 0.0
        %822 = vmatpush1.msra.mxu0 0.0
        %823 = vmatprep.subr.mxu0 0.0
        %824 = vmatpush1.msra.mxu0 0.0
        %825 = vmatprep.subr.mxu0 0.0
        %826 = vmatpush1.msra.mxu0 0.0
        %827 = vmatprep.subr.mxu0 0.0
        %828 = vmatpush1.msra.mxu0 0.0
        %829 = vmatprep.subr.mxu0 0.0
        %830 = vmatpush1.msra.mxu0 0.0
        %831 = vmatprep.subr.mxu0 0.0
        %832 = vmatpush1.msra.mxu0 0.0
        %833 = vmatprep.subr.mxu0 0.0
        %834 = vmatpush1.msra.mxu0 0.0
        %835 = vmatprep.subr.mxu0 0.0
        %836 = vmatpush1.msra.mxu0 0.0
        %837 = vmatprep.subr.mxu0 0.0
        %838 = vmatpush1.msra.mxu0 0.0
        %839 = vmatprep.subr.mxu0 0.0
        %840 = vmatpush1.msra.mxu0 0.0
        %841 = vmatprep.subr.mxu0 0.0
        %842 = vmatpush1.msra.mxu0 0.0
        %843 = vmatprep.subr.mxu0 0.0
        %844 = vmatpush1.msra.mxu0 0.0
        %845 = vmatprep.subr.mxu0 0.0
        %846 = vmatpush1.msra.mxu0 0.0
        %847 = vmatprep.subr.mxu0 0.0
        %848 = vmatpush1.msra.mxu0 0.0
        %849 = vmatprep.subr.mxu0 0.0
        %850 = vmatpush1.msra.mxu0 0.0
        %851 = vmatprep.subr.mxu0 0.0
        %852 = vmatpush1.msra.mxu0 0.0
        %853 = vmatprep.subr.mxu0 0.0
        %854 = vmatpush1.msra.mxu0 0.0
        %855 = vmatprep.subr.mxu0 0.0
        %856 = vmatpush1.msra.mxu0 0.0
        %857 = vmatprep.subr.mxu0 0.0
        %858 = vmatpush1.msra.mxu0 0.0
        %859 = vmatprep.mubr.f32.mxu0 0.0
        %860 = vmatmul.mubr.f32.gmra.mrb[0].mxu0 %v700
        %v861 = vpop.f32.mrb[0].mxu0
        %v862 = vadd.f32 0.0, %v861
        %v863 = vpop.f32.mrb[0].mxu0
        %v864 = vadd.f32 0.0, %v863
        %865 = vmatprep.mubr.f32.mxu0 0.0
        %866 = vmatmul.mubr.f32.gmra.mrb[0].mxu0 %v703
        %v867 = vpop.f32.mrb[0].mxu0
        %v868 = vadd.f32 0.0, %v867
        %v869 = vpop.f32.mrb[0].mxu0
        %v870 = vadd.f32 0.0, %v869
        %871 = vmatprep.mubr.f32.mxu0 0.0
        %872 = vmatmul.mubr.f32.gmra.mrb[0].mxu0 %v706
        %v873 = vpop.f32.mrb[0].mxu0
        %v874 = vadd.f32 0.0, %v873
        %v875 = vpop.f32.mrb[0].mxu0
        %v876 = vadd.f32 0.0, %v875
        %877 = vmatprep.mubr.f32.mxu0 0.0
        %878 = vmatmul.mubr.f32.gmra.mrb[0].mxu0 %v709
        %v879 = vpop.f32.mrb[0].mxu0
        %v880 = vadd.f32 0.0, %v879
        %v881 = vpop.f32.mrb[0].mxu0
        %v882 = vadd.f32 0.0, %v881
        %883 = vmatprep.mubr.f32.mxu0 0.0
        %884 = vmatmul.mubr.f32.gmra.mrb[0].mxu0 %v712
        %v885 = vpop.f32.mrb[0].mxu0
        %v886 = vadd.f32 0.0, %v885
        %v887 = vpop.f32.mrb[0].mxu0
        %v888 = vadd.f32 0.0, %v887
        %889 = vmatprep.mubr.f32.mxu0 0.0
        %890 = vmatmul.mubr.f32.gmra.mrb[0].mxu0 %v715
        %v891 = vpop.f32.mrb[0].mxu0
        %v892 = vadd.f32 0.0, %v891
        %v893 = vpop.f32.mrb[0].mxu0
        %v894 = vadd.f32 0.0, %v893
        %895 = vmatprep.mubr.f32.mxu0 0.0
        %896 = vmatmul.mubr.f32.gmra.mrb[0].mxu0 %v718
        %v897 = vpop.f32.mrb[0].mxu0
        %v898 = vadd.f32 0.0, %v897
        %v899 = vpop.f32.mrb[0].mxu0
        %v900 = vadd.f32 0.0, %v899
        %901 = vmatprep.mubr.f32.mxu0 0.0
        %902 = vmatmul.mubr.f32.gmra.mrb[0].mxu0 %v721
        %v903 = vpop.f32.mrb[0].mxu0
        %v904 = vadd.f32 0.0, %v903
        %v905 = vpop.f32.mrb[0].mxu0
        %v906 = vadd.f32 0.0, %v905
        %907 = vmatprep.mubr.f32.mxu0 0.0
        %908 = vmatmul.mubr.f32.gmra.mrb[0].mxu0 %v724
        %v909 = vpop.f32.mrb[0].mxu0
        %v910 = vadd.f32 0.0, %v909
        %v911 = vpop.f32.mrb[0].mxu0
        %v912 = vadd.f32 0.0, %v911
        %913 = vmatprep.mubr.f32.mxu0 0.0
        %914 = vmatmul.mubr.f32.gmra.mrb[0].mxu0 %v727
        %v915 = vpop.f32.mrb[0].mxu0
        %v916 = vadd.f32 0.0, %v915
        %v917 = vpop.f32.mrb[0].mxu0
        %v918 = vadd.f32 0.0, %v917
        %919 = vmatprep.mubr.f32.mxu0 0.0
        %920 = vmatmul.mubr.f32.gmra.mrb[0].mxu0 %v730
        %v921 = vpop.f32.mrb[0].mxu0
        %v922 = vadd.f32 0.0, %v921
        %v923 = vpop.f32.mrb[0].mxu0
        %v924 = vadd.f32 0.0, %v923
        %925 = vmatprep.mubr.f32.mxu0 0.0
        %926 = vmatmul.mubr.f32.gmra.mrb[0].mxu0 %v733
        %v927 = vpop.f32.mrb[0].mxu0
        %v928 = vadd.f32 0.0, %v927
        %v929 = vpop.f32.mrb[0].mxu0
        %v930 = vadd.f32 0.0, %v929
        %931 = vmatprep.mubr.f32.mxu0 0.0
        %932 = vmatmul.mubr.f32.gmra.mrb[0].mxu0 %v736
        %v933 = vpop.f32.mrb[0].mxu0
        %v934 = vadd.f32 0.0, %v933
        %v935 = vpop.f32.mrb[0].mxu0
        %v936 = vadd.f32 0.0, %v935
        %937 = vmatprep.mubr.f32.mxu0 0.0
        %938 = vmatmul.mubr.f32.gmra.mrb[0].mxu0 %v739
        %v939 = vpop.f32.mrb[0].mxu0
        %v940 = vadd.f32 0.0, %v939
        %v941 = vpop.f32.mrb[0].mxu0
        %v942 = vadd.f32 0.0, %v941
        %943 = vmatprep.mubr.f32.mxu0 0.0
        %944 = vmatmul.mubr.f32.gmra.mrb[0].mxu0 %v742
        %v945 = vpop.f32.mrb[0].mxu0
        %v946 = vadd.f32 0.0, %v945
        %v947 = vpop.f32.mrb[0].mxu0
        %v948 = vadd.f32 0.0, %v947
        %949 = vmatprep.mubr.f32.mxu0 0.0
        %950 = vmatmul.mubr.f32.gmra.mrb[0].mxu0 %v745
        %v951 = vpop.f32.mrb[0].mxu0
        %v952 = vadd.f32 0.0, %v951
        %v953 = vpop.f32.mrb[0].mxu0
        %v954 = vadd.f32 0.0, %v953
        %955 = vmatprep.mubr.f32.mxu0 0.0
        %956 = vmatmul.mubr.f32.gmra.mrb[0].mxu0 %v748
        %v957 = vpop.f32.mrb[0].mxu0
        %v958 = vadd.f32 0.0, %v957
        %v959 = vpop.f32.mrb[0].mxu0
        %v960 = vadd.f32 0.0, %v959
        %961 = vmatprep.mubr.f32.mxu0 0.0
        %962 = vmatmul.mubr.f32.gmra.mrb[0].mxu0 %v751
        %v963 = vpop.f32.mrb[0].mxu0
        %v964 = vadd.f32 0.0, %v963
        %v965 = vpop.f32.mrb[0].mxu0
        %v966 = vadd.f32 0.0, %v965
        %967 = vmatprep.mubr.f32.mxu0 0.0
        %968 = vmatmul.mubr.f32.gmra.mrb[0].mxu0 %v754
        %v969 = vpop.f32.mrb[0].mxu0
        %v970 = vadd.f32 0.0, %v969
        %v971 = vpop.f32.mrb[0].mxu0
        %v972 = vadd.f32 0.0, %v971
        %973 = vmatprep.mubr.f32.mxu0 0.0
        %974 = vmatmul.mubr.f32.gmra.mrb[0].mxu0 %v757
        %v975 = vpop.f32.mrb[0].mxu0
        %v976 = vadd.f32 0.0, %v975
        %v977 = vpop.f32.mrb[0].mxu0
        %v978 = vadd.f32 0.0, %v977
        %979 = vmatprep.mubr.f32.mxu0 0.0
        %980 = vmatmul.mubr.f32.gmra.mrb[0].mxu0 %v760
        %v981 = vpop.f32.mrb[0].mxu0
        %v982 = vadd.f32 0.0, %v981
        %v983 = vpop.f32.mrb[0].mxu0
        %v984 = vadd.f32 0.0, %v983
        %985 = vmatprep.mubr.f32.mxu0 0.0
        %986 = vmatmul.mubr.f32.gmra.mrb[0].mxu0 %v763
        %v987 = vpop.f32.mrb[0].mxu0
        %v988 = vadd.f32 0.0, %v987
        %v989 = vpop.f32.mrb[0].mxu0
        %v990 = vadd.f32 0.0, %v989
        %991 = vmatprep.mubr.f32.mxu0 0.0
        %992 = vmatmul.mubr.f32.gmra.mrb[0].mxu0 %v766
        %v993 = vpop.f32.mrb[0].mxu0
        %v994 = vadd.f32 0.0, %v993
        %v995 = vpop.f32.mrb[0].mxu0
        %v996 = vadd.f32 0.0, %v995
        %997 = vmatprep.mubr.f32.mxu0 0.0
        %998 = vmatmul.mubr.f32.gmra.mrb[0].mxu0 %v769
        %v999 = vpop.f32.mrb[0].mxu0
        %v1000 = vadd.f32 0.0, %v999
        %v1001 = vpop.f32.mrb[0].mxu0
        %v1002 = vadd.f32 0.0, %v1001
        %1003 = vmatprep.mubr.f32.mxu0 0.0
        %1004 = vmatmul.mubr.f32.gmra.mrb[0].mxu0 %v772
        %v1005 = vpop.f32.mrb[0].mxu0
        %v1006 = vadd.f32 0.0, %v1005
        %v1007 = vpop.f32.mrb[0].mxu0
        %v1008 = vadd.f32 0.0, %v1007
        %1009 = vmatprep.mubr.f32.mxu0 0.0
        %1010 = vmatmul.mubr.f32.gmra.mrb[0].mxu0 %v775
        %v1011 = vpop.f32.mrb[0].mxu0
        %v1012 = vadd.f32 0.0, %v1011
        %v1013 = vpop.f32.mrb[0].mxu0
        %v1014 = vadd.f32 0.0, %v1013
        %1015 = vmatprep.mubr.f32.mxu0 0.0
        %1016 = vmatmul.mubr.f32.gmra.mrb[0].mxu0 %v778
        %v1017 = vpop.f32.mrb[0].mxu0
        %v1018 = vadd.f32 0.0, %v1017
        %v1019 = vpop.f32.mrb[0].mxu0
        %v1020 = vadd.f32 0.0, %v1019
        %1021 = vmatprep.mubr.f32.mxu0 0.0
        %1022 = vmatmul.mubr.f32.gmra.mrb[0].mxu0 %v781
        %v1023 = vpop.f32.mrb[0].mxu0
        %v1024 = vadd.f32 0.0, %v1023
        %v1025 = vpop.f32.mrb[0].mxu0
        %v1026 = vadd.f32 0.0, %v1025
        %1027 = vmatprep.mubr.f32.mxu0 0.0
        %1028 = vmatmul.mubr.f32.gmra.mrb[0].mxu0 %v784
        %v1029 = vpop.f32.mrb[0].mxu0
        %v1030 = vadd.f32 0.0, %v1029
        %v1031 = vpop.f32.mrb[0].mxu0
        %v1032 = vadd.f32 0.0, %v1031
        %1033 = vmatprep.mubr.f32.mxu0 0.0
        %1034 = vmatmul.mubr.f32.gmra.mrb[0].mxu0 %v787
        %v1035 = vpop.f32.mrb[0].mxu0
        %v1036 = vadd.f32 0.0, %v1035
        %v1037 = vpop.f32.mrb[0].mxu0
        %v1038 = vadd.f32 0.0, %v1037
        %1039 = vmatprep.mubr.f32.mxu0 0.0
        %1040 = vmatmul.mubr.f32.gmra.mrb[0].mxu0 %v790
        %v1041 = vpop.f32.mrb[0].mxu0
        %v1042 = vadd.f32 0.0, %v1041
        %v1043 = vpop.f32.mrb[0].mxu0
        %v1044 = vadd.f32 0.0, %v1043
        %1045 = vmatprep.mubr.f32.mxu0 0.0
        %1046 = vmatmul.mubr.f32.gmra.mrb[0].mxu0 %v793
        %v1047 = vpop.f32.mrb[0].mxu0
        %v1048 = vadd.f32 0.0, %v1047
        %v1049 = vpop.f32.mrb[0].mxu0
        %v1050 = vadd.f32 0.0, %v1049
        %1051 = vdwg.mxu0
        %v1052 = vmax.f32 %v862, %v864
        %1053 = vmax.xlane.f32.xlu0 %v1052
        %v1054 = vpop.xlane.xlu0 %1053
        %v1055 = vmax.f32 %v868, %v870
        %1056 = vmax.xlane.f32.xlu0 %v1055
        %v1057 = vpop.xlane.xlu0 %1056
        %v1058 = vmax.f32 %v874, %v876
        %1059 = vmax.xlane.f32.xlu0 %v1058
        %v1060 = vpop.xlane.xlu0 %1059
        %v1061 = vmax.f32 %v880, %v882
        %1062 = vmax.xlane.f32.xlu0 %v1061
        %v1063 = vpop.xlane.xlu0 %1062
        %v1064 = vmax.f32 %v886, %v888
        %1065 = vmax.xlane.f32.xlu0 %v1064
        %v1066 = vpop.xlane.xlu0 %1065
        %v1067 = vmax.f32 %v892, %v894
        %1068 = vmax.xlane.f32.xlu0 %v1067
        %v1069 = vpop.xlane.xlu0 %1068
        %v1070 = vmax.f32 %v898, %v900
        %1071 = vmax.xlane.f32.xlu0 %v1070
        %v1072 = vpop.xlane.xlu0 %1071
        %v1073 = vmax.f32 %v904, %v906
        %1074 = vmax.xlane.f32.xlu0 %v1073
        %v1075 = vpop.xlane.xlu0 %1074
        %v1076 = vmax.f32 %v910, %v912
        %1077 = vmax.xlane.f32.xlu0 %v1076
        %v1078 = vpop.xlane.xlu0 %1077
        %v1079 = vmax.f32 %v916, %v918
        %1080 = vmax.xlane.f32.xlu0 %v1079
        %v1081 = vpop.xlane.xlu0 %1080
        %v1082 = vmax.f32 %v922, %v924
        %1083 = vmax.xlane.f32.xlu0 %v1082
        %v1084 = vpop.xlane.xlu0 %1083
        %v1085 = vmax.f32 %v928, %v930
        %1086 = vmax.xlane.f32.xlu0 %v1085
        %v1087 = vpop.xlane.xlu0 %1086
        %v1088 = vmax.f32 %v934, %v936
        %1089 = vmax.xlane.f32.xlu0 %v1088
        %v1090 = vpop.xlane.xlu0 %1089
        %v1091 = vmax.f32 %v940, %v942
        %1092 = vmax.xlane.f32.xlu0 %v1091
        %v1093 = vpop.xlane.xlu0 %1092
        %v1094 = vmax.f32 %v946, %v948
        %1095 = vmax.xlane.f32.xlu0 %v1094
        %v1096 = vpop.xlane.xlu0 %1095
        %v1097 = vmax.f32 %v952, %v954
        %1098 = vmax.xlane.f32.xlu0 %v1097
        %v1099 = vpop.xlane.xlu0 %1098
        %v1100 = vmax.f32 %v958, %v960
        %1101 = vmax.xlane.f32.xlu0 %v1100
        %v1102 = vpop.xlane.xlu0 %1101
        %v1103 = vmax.f32 %v964, %v966
        %1104 = vmax.xlane.f32.xlu0 %v1103
        %v1105 = vpop.xlane.xlu0 %1104
        %v1106 = vmax.f32 %v970, %v972
        %1107 = vmax.xlane.f32.xlu0 %v1106
        %v1108 = vpop.xlane.xlu0 %1107
        %v1109 = vmax.f32 %v976, %v978
        %1110 = vmax.xlane.f32.xlu0 %v1109
        %v1111 = vpop.xlane.xlu0 %1110
        %v1112 = vmax.f32 %v982, %v984
        %1113 = vmax.xlane.f32.xlu0 %v1112
        %v1114 = vpop.xlane.xlu0 %1113
        %v1115 = vmax.f32 %v988, %v990
        %1116 = vmax.xlane.f32.xlu0 %v1115
        %v1117 = vpop.xlane.xlu0 %1116
        %v1118 = vmax.f32 %v994, %v996
        %1119 = vmax.xlane.f32.xlu0 %v1118
        %v1120 = vpop.xlane.xlu0 %1119
        %v1121 = vmax.f32 %v1000, %v1002
        %1122 = vmax.xlane.f32.xlu0 %v1121
        %v1123 = vpop.xlane.xlu0 %1122
        %v1124 = vmax.f32 %v1006, %v1008
        %1125 = vmax.xlane.f32.xlu0 %v1124
        %v1126 = vpop.xlane.xlu0 %1125
        %v1127 = vmax.f32 %v1012, %v1014
        %1128 = vmax.xlane.f32.xlu0 %v1127
        %v1129 = vpop.xlane.xlu0 %1128
        %v1130 = vmax.f32 %v1018, %v1020
        %1131 = vmax.xlane.f32.xlu0 %v1130
        %v1132 = vpop.xlane.xlu0 %1131
        %v1133 = vmax.f32 %v1024, %v1026
        %1134 = vmax.xlane.f32.xlu0 %v1133
        %v1135 = vpop.xlane.xlu0 %1134
        %v1136 = vmax.f32 %v1030, %v1032
        %1137 = vmax.xlane.f32.xlu0 %v1136
        %v1138 = vpop.xlane.xlu0 %1137
        %v1139 = vmax.f32 %v1036, %v1038
        %1140 = vmax.xlane.f32.xlu0 %v1139
        %v1141 = vpop.xlane.xlu0 %1140
        %v1142 = vmax.f32 %v1042, %v1044
        %1143 = vmax.xlane.f32.xlu0 %v1142
        %v1144 = vpop.xlane.xlu0 %1143
        %v1145 = vmax.f32 %v1048, %v1050
        %1146 = vmax.xlane.f32.xlu0 %v1145
        %v1147 = vpop.xlane.xlu0 %1146
        %v1148 = vmax.f32 %v1054, -1e+30
        %v1149 = vmax.f32 %v1057, -1e+30
        %v1150 = vmax.f32 %v1060, -1e+30
        %v1151 = vmax.f32 %v1063, -1e+30
        %v1152 = vmax.f32 %v1066, -1e+30
        %v1153 = vmax.f32 %v1069, -1e+30
        %v1154 = vmax.f32 %v1072, -1e+30
        %v1155 = vmax.f32 %v1075, -1e+30
        %v1156 = vmax.f32 %v1078, -1e+30
        %v1157 = vmax.f32 %v1081, -1e+30
        %v1158 = vmax.f32 %v1084, -1e+30
        %v1159 = vmax.f32 %v1087, -1e+30
        %v1160 = vmax.f32 %v1090, -1e+30
        %v1161 = vmax.f32 %v1093, -1e+30
        %v1162 = vmax.f32 %v1096, -1e+30
        %v1163 = vmax.f32 %v1099, -1e+30
        %v1164 = vmax.f32 %v1102, -1e+30
        %v1165 = vmax.f32 %v1105, -1e+30
        %v1166 = vmax.f32 %v1108, -1e+30
        %v1167 = vmax.f32 %v1111, -1e+30
        %v1168 = vmax.f32 %v1114, -1e+30
        %v1169 = vmax.f32 %v1117, -1e+30
        %v1170 = vmax.f32 %v1120, -1e+30
        %v1171 = vmax.f32 %v1123, -1e+30
        %v1172 = vmax.f32 %v1126, -1e+30
        %v1173 = vmax.f32 %v1129, -1e+30
        %v1174 = vmax.f32 %v1132, -1e+30
        %v1175 = vmax.f32 %v1135, -1e+30
        %v1176 = vmax.f32 %v1138, -1e+30
        %v1177 = vmax.f32 %v1141, -1e+30
        %v1178 = vmax.f32 %v1144, -1e+30
        %v1179 = vmax.f32 %v1147, -1e+30
        %v1180 = vsub.f32 -1e+30, %v1148
        %v1181 = vsub.f32 -1e+30, %v1149
        %v1182 = vsub.f32 -1e+30, %v1150
        %v1183 = vsub.f32 -1e+30, %v1151
        %v1184 = vsub.f32 -1e+30, %v1152
        %v1185 = vsub.f32 -1e+30, %v1153
        %v1186 = vsub.f32 -1e+30, %v1154
        %v1187 = vsub.f32 -1e+30, %v1155
        %v1188 = vsub.f32 -1e+30, %v1156
        %v1189 = vsub.f32 -1e+30, %v1157
        %v1190 = vsub.f32 -1e+30, %v1158
        %v1191 = vsub.f32 -1e+30, %v1159
        %v1192 = vsub.f32 -1e+30, %v1160
        %v1193 = vsub.f32 -1e+30, %v1161
        %v1194 = vsub.f32 -1e+30, %v1162
        %v1195 = vsub.f32 -1e+30, %v1163
        %v1196 = vsub.f32 -1e+30, %v1164
        %v1197 = vsub.f32 -1e+30, %v1165
        %v1198 = vsub.f32 -1e+30, %v1166
        %v1199 = vsub.f32 -1e+30, %v1167
        %v1200 = vsub.f32 -1e+30, %v1168
        %v1201 = vsub.f32 -1e+30, %v1169
        %v1202 = vsub.f32 -1e+30, %v1170
        %v1203 = vsub.f32 -1e+30, %v1171
        %v1204 = vsub.f32 -1e+30, %v1172
        %v1205 = vsub.f32 -1e+30, %v1173
        %v1206 = vsub.f32 -1e+30, %v1174
        %v1207 = vsub.f32 -1e+30, %v1175
        %v1208 = vsub.f32 -1e+30, %v1176
        %v1209 = vsub.f32 -1e+30, %v1177
        %v1210 = vsub.f32 -1e+30, %v1178
        %v1211 = vsub.f32 -1e+30, %v1179
        %v1212 = vmul.f32 %v1180, 1.442695
        %v1213 = vpow.pop %v1212
        %v1214 = vmul.f32 %v1181, 1.442695
        %v1215 = vpow.pop %v1214
        %v1216 = vmul.f32 %v1182, 1.442695
        %v1217 = vpow.pop %v1216
        %v1218 = vmul.f32 %v1183, 1.442695
        %v1219 = vpow.pop %v1218
        %v1220 = vmul.f32 %v1184, 1.442695
        %v1221 = vpow.pop %v1220
        %v1222 = vmul.f32 %v1185, 1.442695
        %v1223 = vpow.pop %v1222
        %v1224 = vmul.f32 %v1186, 1.442695
        %v1225 = vpow.pop %v1224
        %v1226 = vmul.f32 %v1187, 1.442695
        %v1227 = vpow.pop %v1226
        %v1228 = vmul.f32 %v1188, 1.442695
        %v1229 = vpow.pop %v1228
        %v1230 = vmul.f32 %v1189, 1.442695
        %v1231 = vpow.pop %v1230
        %v1232 = vmul.f32 %v1190, 1.442695
        %v1233 = vpow.pop %v1232
        %v1234 = vmul.f32 %v1191, 1.442695
        %v1235 = vpow.pop %v1234
        %v1236 = vmul.f32 %v1192, 1.442695
        %v1237 = vpow.pop %v1236
        %v1238 = vmul.f32 %v1193, 1.442695
        %v1239 = vpow.pop %v1238
        %v1240 = vmul.f32 %v1194, 1.442695
        %v1241 = vpow.pop %v1240
        %v1242 = vmul.f32 %v1195, 1.442695
        %v1243 = vpow.pop %v1242
        %v1244 = vmul.f32 %v1196, 1.442695
        %v1245 = vpow.pop %v1244
        %v1246 = vmul.f32 %v1197, 1.442695
        %v1247 = vpow.pop %v1246
        %v1248 = vmul.f32 %v1198, 1.442695
        %v1249 = vpow.pop %v1248
        %v1250 = vmul.f32 %v1199, 1.442695
        %v1251 = vpow.pop %v1250
        %v1252 = vmul.f32 %v1200, 1.442695
        %v1253 = vpow.pop %v1252
        %v1254 = vmul.f32 %v1201, 1.442695
        %v1255 = vpow.pop %v1254
        %v1256 = vmul.f32 %v1202, 1.442695
        %v1257 = vpow.pop %v1256
        %v1258 = vmul.f32 %v1203, 1.442695
        %v1259 = vpow.pop %v1258
        %v1260 = vmul.f32 %v1204, 1.442695
        %v1261 = vpow.pop %v1260
        %v1262 = vmul.f32 %v1205, 1.442695
        %v1263 = vpow.pop %v1262
        %v1264 = vmul.f32 %v1206, 1.442695
        %v1265 = vpow.pop %v1264
        %v1266 = vmul.f32 %v1207, 1.442695
        %v1267 = vpow.pop %v1266
        %v1268 = vmul.f32 %v1208, 1.442695
        %v1269 = vpow.pop %v1268
        %v1270 = vmul.f32 %v1209, 1.442695
        %v1271 = vpow.pop %v1270
        %v1272 = vmul.f32 %v1210, 1.442695
        %v1273 = vpow.pop %v1272
        %v1274 = vmul.f32 %v1211, 1.442695
        %v1275 = vpow.pop %v1274
        %v1276 = vsub.f32 %v862, %v1148
        %v1277 = vsub.f32 %v864, %v1148
        %v1278 = vsub.f32 %v868, %v1149
        %v1279 = vsub.f32 %v870, %v1149
        %v1280 = vsub.f32 %v874, %v1150
        %v1281 = vsub.f32 %v876, %v1150
        %v1282 = vsub.f32 %v880, %v1151
        %v1283 = vsub.f32 %v882, %v1151
        %v1284 = vsub.f32 %v886, %v1152
        %v1285 = vsub.f32 %v888, %v1152
        %v1286 = vsub.f32 %v892, %v1153
        %v1287 = vsub.f32 %v894, %v1153
        %v1288 = vsub.f32 %v898, %v1154
        %v1289 = vsub.f32 %v900, %v1154
        %v1290 = vsub.f32 %v904, %v1155
        %v1291 = vsub.f32 %v906, %v1155
        %v1292 = vsub.f32 %v910, %v1156
        %v1293 = vsub.f32 %v912, %v1156
        %v1294 = vsub.f32 %v916, %v1157
        %v1295 = vsub.f32 %v918, %v1157
        %v1296 = vsub.f32 %v922, %v1158
        %v1297 = vsub.f32 %v924, %v1158
        %v1298 = vsub.f32 %v928, %v1159
        %v1299 = vsub.f32 %v930, %v1159
        %v1300 = vsub.f32 %v934, %v1160
        %v1301 = vsub.f32 %v936, %v1160
        %v1302 = vsub.f32 %v940, %v1161
        %v1303 = vsub.f32 %v942, %v1161
        %v1304 = vsub.f32 %v946, %v1162
        %v1305 = vsub.f32 %v948, %v1162
        %v1306 = vsub.f32 %v952, %v1163
        %v1307 = vsub.f32 %v954, %v1163
        %v1308 = vsub.f32 %v958, %v1164
        %v1309 = vsub.f32 %v960, %v1164
        %v1310 = vsub.f32 %v964, %v1165
        %v1311 = vsub.f32 %v966, %v1165
        %v1312 = vsub.f32 %v970, %v1166
        %v1313 = vsub.f32 %v972, %v1166
        %v1314 = vsub.f32 %v976, %v1167
        %v1315 = vsub.f32 %v978, %v1167
        %v1316 = vsub.f32 %v982, %v1168
        %v1317 = vsub.f32 %v984, %v1168
        %v1318 = vsub.f32 %v988, %v1169
        %v1319 = vsub.f32 %v990, %v1169
        %v1320 = vsub.f32 %v994, %v1170
        %v1321 = vsub.f32 %v996, %v1170
        %v1322 = vsub.f32 %v1000, %v1171
        %v1323 = vsub.f32 %v1002, %v1171
        %v1324 = vsub.f32 %v1006, %v1172
        %v1325 = vsub.f32 %v1008, %v1172
        %v1326 = vsub.f32 %v1012, %v1173
        %v1327 = vsub.f32 %v1014, %v1173
        %v1328 = vsub.f32 %v1018, %v1174
        %v1329 = vsub.f32 %v1020, %v1174
        %v1330 = vsub.f32 %v1024, %v1175
        %v1331 = vsub.f32 %v1026, %v1175
        %v1332 = vsub.f32 %v1030, %v1176
        %v1333 = vsub.f32 %v1032, %v1176
        %v1334 = vsub.f32 %v1036, %v1177
        %v1335 = vsub.f32 %v1038, %v1177
        %v1336 = vsub.f32 %v1042, %v1178
        %v1337 = vsub.f32 %v1044, %v1178
        %v1338 = vsub.f32 %v1048, %v1179
        %v1339 = vsub.f32 %v1050, %v1179
        %v1340 = vmul.f32 %v1276, 1.442695
        %v1341 = vpow.pop %v1340
        %v1342 = vmul.f32 %v1277, 1.442695
        %v1343 = vpow.pop %v1342
        %v1344 = vmul.f32 %v1278, 1.442695
        %v1345 = vpow.pop %v1344
        %v1346 = vmul.f32 %v1279, 1.442695
        %v1347 = vpow.pop %v1346
        %v1348 = vmul.f32 %v1280, 1.442695
        %v1349 = vpow.pop %v1348
        %v1350 = vmul.f32 %v1281, 1.442695
        %v1351 = vpow.pop %v1350
        %v1352 = vmul.f32 %v1282, 1.442695
        %v1353 = vpow.pop %v1352
        %v1354 = vmul.f32 %v1283, 1.442695
        %v1355 = vpow.pop %v1354
        %v1356 = vmul.f32 %v1284, 1.442695
        %v1357 = vpow.pop %v1356
        %v1358 = vmul.f32 %v1285, 1.442695
        %v1359 = vpow.pop %v1358
        %v1360 = vmul.f32 %v1286, 1.442695
        %v1361 = vpow.pop %v1360
        %v1362 = vmul.f32 %v1287, 1.442695
        %v1363 = vpow.pop %v1362
        %v1364 = vmul.f32 %v1288, 1.442695
        %v1365 = vpow.pop %v1364
        %v1366 = vmul.f32 %v1289, 1.442695
        %v1367 = vpow.pop %v1366
        %v1368 = vmul.f32 %v1290, 1.442695
        %v1369 = vpow.pop %v1368
        %v1370 = vmul.f32 %v1291, 1.442695
        %v1371 = vpow.pop %v1370
        %v1372 = vmul.f32 %v1292, 1.442695
        %v1373 = vpow.pop %v1372
        %v1374 = vmul.f32 %v1293, 1.442695
        %v1375 = vpow.pop %v1374
        %v1376 = vmul.f32 %v1294, 1.442695
        %v1377 = vpow.pop %v1376
        %v1378 = vmul.f32 %v1295, 1.442695
        %v1379 = vpow.pop %v1378
        %v1380 = vmul.f32 %v1296, 1.442695
        %v1381 = vpow.pop %v1380
        %v1382 = vmul.f32 %v1297, 1.442695
        %v1383 = vpow.pop %v1382
        %v1384 = vmul.f32 %v1298, 1.442695
        %v1385 = vpow.pop %v1384
        %v1386 = vmul.f32 %v1299, 1.442695
        %v1387 = vpow.pop %v1386
        %v1388 = vmul.f32 %v1300, 1.442695
        %v1389 = vpow.pop %v1388
        %v1390 = vmul.f32 %v1301, 1.442695
        %v1391 = vpow.pop %v1390
        %v1392 = vmul.f32 %v1302, 1.442695
        %v1393 = vpow.pop %v1392
        %v1394 = vmul.f32 %v1303, 1.442695
        %v1395 = vpow.pop %v1394
        %v1396 = vmul.f32 %v1304, 1.442695
        %v1397 = vpow.pop %v1396
        %v1398 = vmul.f32 %v1305, 1.442695
        %v1399 = vpow.pop %v1398
        %v1400 = vmul.f32 %v1306, 1.442695
        %v1401 = vpow.pop %v1400
        %v1402 = vmul.f32 %v1307, 1.442695
        %v1403 = vpow.pop %v1402
        %v1404 = vmul.f32 %v1308, 1.442695
        %v1405 = vpow.pop %v1404
        %v1406 = vmul.f32 %v1309, 1.442695
        %v1407 = vpow.pop %v1406
        %v1408 = vmul.f32 %v1310, 1.442695
        %v1409 = vpow.pop %v1408
        %v1410 = vmul.f32 %v1311, 1.442695
        %v1411 = vpow.pop %v1410
        %v1412 = vmul.f32 %v1312, 1.442695
        %v1413 = vpow.pop %v1412
        %v1414 = vmul.f32 %v1313, 1.442695
        %v1415 = vpow.pop %v1414
        %v1416 = vmul.f32 %v1314, 1.442695
        %v1417 = vpow.pop %v1416
        %v1418 = vmul.f32 %v1315, 1.442695
        %v1419 = vpow.pop %v1418
        %v1420 = vmul.f32 %v1316, 1.442695
        %v1421 = vpow.pop %v1420
        %v1422 = vmul.f32 %v1317, 1.442695
        %v1423 = vpow.pop %v1422
        %v1424 = vmul.f32 %v1318, 1.442695
        %v1425 = vpow.pop %v1424
        %v1426 = vmul.f32 %v1319, 1.442695
        %v1427 = vpow.pop %v1426
        %v1428 = vmul.f32 %v1320, 1.442695
        %v1429 = vpow.pop %v1428
        %v1430 = vmul.f32 %v1321, 1.442695
        %v1431 = vpow.pop %v1430
        %v1432 = vmul.f32 %v1322, 1.442695
        %v1433 = vpow.pop %v1432
        %v1434 = vmul.f32 %v1323, 1.442695
        %v1435 = vpow.pop %v1434
        %v1436 = vmul.f32 %v1324, 1.442695
        %v1437 = vpow.pop %v1436
        %v1438 = vmul.f32 %v1325, 1.442695
        %v1439 = vpow.pop %v1438
        %v1440 = vmul.f32 %v1326, 1.442695
        %v1441 = vpow.pop %v1440
        %v1442 = vmul.f32 %v1327, 1.442695
        %v1443 = vpow.pop %v1442
        %v1444 = vmul.f32 %v1328, 1.442695
        %v1445 = vpow.pop %v1444
        %v1446 = vmul.f32 %v1329, 1.442695
        %v1447 = vpow.pop %v1446
        %v1448 = vmul.f32 %v1330, 1.442695
        %v1449 = vpow.pop %v1448
        %v1450 = vmul.f32 %v1331, 1.442695
        %v1451 = vpow.pop %v1450
        %v1452 = vmul.f32 %v1332, 1.442695
        %v1453 = vpow.pop %v1452
        %v1454 = vmul.f32 %v1333, 1.442695
        %v1455 = vpow.pop %v1454
        %v1456 = vmul.f32 %v1334, 1.442695
        %v1457 = vpow.pop %v1456
        %v1458 = vmul.f32 %v1335, 1.442695
        %v1459 = vpow.pop %v1458
        %v1460 = vmul.f32 %v1336, 1.442695
        %v1461 = vpow.pop %v1460
        %v1462 = vmul.f32 %v1337, 1.442695
        %v1463 = vpow.pop %v1462
        %v1464 = vmul.f32 %v1338, 1.442695
        %v1465 = vpow.pop %v1464
        %v1466 = vmul.f32 %v1339, 1.442695
        %v1467 = vpow.pop %v1466
        %v1468 = vmul.f32 %v1213, 0.0
        %v1469 = vmul.f32 %v1215, 0.0
        %v1470 = vmul.f32 %v1217, 0.0
        %v1471 = vmul.f32 %v1219, 0.0
        %v1472 = vmul.f32 %v1221, 0.0
        %v1473 = vmul.f32 %v1223, 0.0
        %v1474 = vmul.f32 %v1225, 0.0
        %v1475 = vmul.f32 %v1227, 0.0
        %v1476 = vmul.f32 %v1229, 0.0
        %v1477 = vmul.f32 %v1231, 0.0
        %v1478 = vmul.f32 %v1233, 0.0
        %v1479 = vmul.f32 %v1235, 0.0
        %v1480 = vmul.f32 %v1237, 0.0
        %v1481 = vmul.f32 %v1239, 0.0
        %v1482 = vmul.f32 %v1241, 0.0
        %v1483 = vmul.f32 %v1243, 0.0
        %v1484 = vmul.f32 %v1245, 0.0
        %v1485 = vmul.f32 %v1247, 0.0
        %v1486 = vmul.f32 %v1249, 0.0
        %v1487 = vmul.f32 %v1251, 0.0
        %v1488 = vmul.f32 %v1253, 0.0
        %v1489 = vmul.f32 %v1255, 0.0
        %v1490 = vmul.f32 %v1257, 0.0
        %v1491 = vmul.f32 %v1259, 0.0
        %v1492 = vmul.f32 %v1261, 0.0
        %v1493 = vmul.f32 %v1263, 0.0
        %v1494 = vmul.f32 %v1265, 0.0
        %v1495 = vmul.f32 %v1267, 0.0
        %v1496 = vmul.f32 %v1269, 0.0
        %v1497 = vmul.f32 %v1271, 0.0
        %v1498 = vmul.f32 %v1273, 0.0
        %v1499 = vmul.f32 %v1275, 0.0
        %v1500 = vadd.f32 %v1341, %v1343
        %1501 = vadd.xlane.f32.xlu0 %v1500
        %v1502 = vpop.xlane.xlu0 %1501
        %v1503 = vadd.f32 %v1345, %v1347
        %1504 = vadd.xlane.f32.xlu0 %v1503
        %v1505 = vpop.xlane.xlu0 %1504
        %v1506 = vadd.f32 %v1349, %v1351
        %1507 = vadd.xlane.f32.xlu0 %v1506
        %v1508 = vpop.xlane.xlu0 %1507
        %v1509 = vadd.f32 %v1353, %v1355
        %1510 = vadd.xlane.f32.xlu0 %v1509
        %v1511 = vpop.xlane.xlu0 %1510
        %v1512 = vadd.f32 %v1357, %v1359
        %1513 = vadd.xlane.f32.xlu0 %v1512
        %v1514 = vpop.xlane.xlu0 %1513
        %v1515 = vadd.f32 %v1361, %v1363
        %1516 = vadd.xlane.f32.xlu0 %v1515
        %v1517 = vpop.xlane.xlu0 %1516
        %v1518 = vadd.f32 %v1365, %v1367
        %1519 = vadd.xlane.f32.xlu0 %v1518
        %v1520 = vpop.xlane.xlu0 %1519
        %v1521 = vadd.f32 %v1369, %v1371
        %1522 = vadd.xlane.f32.xlu0 %v1521
        %v1523 = vpop.xlane.xlu0 %1522
        %v1524 = vadd.f32 %v1373, %v1375
        %1525 = vadd.xlane.f32.xlu0 %v1524
        %v1526 = vpop.xlane.xlu0 %1525
        %v1527 = vadd.f32 %v1377, %v1379
        %1528 = vadd.xlane.f32.xlu0 %v1527
        %v1529 = vpop.xlane.xlu0 %1528
        %v1530 = vadd.f32 %v1381, %v1383
        %1531 = vadd.xlane.f32.xlu0 %v1530
        %v1532 = vpop.xlane.xlu0 %1531
        %v1533 = vadd.f32 %v1385, %v1387
        %1534 = vadd.xlane.f32.xlu0 %v1533
        %v1535 = vpop.xlane.xlu0 %1534
        %v1536 = vadd.f32 %v1389, %v1391
        %1537 = vadd.xlane.f32.xlu0 %v1536
        %v1538 = vpop.xlane.xlu0 %1537
        %v1539 = vadd.f32 %v1393, %v1395
        %1540 = vadd.xlane.f32.xlu0 %v1539
        %v1541 = vpop.xlane.xlu0 %1540
        %v1542 = vadd.f32 %v1397, %v1399
        %1543 = vadd.xlane.f32.xlu0 %v1542
        %v1544 = vpop.xlane.xlu0 %1543
        %v1545 = vadd.f32 %v1401, %v1403
        %1546 = vadd.xlane.f32.xlu0 %v1545
        %v1547 = vpop.xlane.xlu0 %1546
        %v1548 = vadd.f32 %v1405, %v1407
        %1549 = vadd.xlane.f32.xlu0 %v1548
        %v1550 = vpop.xlane.xlu0 %1549
        %v1551 = vadd.f32 %v1409, %v1411
        %1552 = vadd.xlane.f32.xlu0 %v1551
        %v1553 = vpop.xlane.xlu0 %1552
        %v1554 = vadd.f32 %v1413, %v1415
        %1555 = vadd.xlane.f32.xlu0 %v1554
        %v1556 = vpop.xlane.xlu0 %1555
        %v1557 = vadd.f32 %v1417, %v1419
        %1558 = vadd.xlane.f32.xlu0 %v1557
        %v1559 = vpop.xlane.xlu0 %1558
        %v1560 = vadd.f32 %v1421, %v1423
        %1561 = vadd.xlane.f32.xlu0 %v1560
        %v1562 = vpop.xlane.xlu0 %1561
        %v1563 = vadd.f32 %v1425, %v1427
        %1564 = vadd.xlane.f32.xlu0 %v1563
        %v1565 = vpop.xlane.xlu0 %1564
        %v1566 = vadd.f32 %v1429, %v1431
        %1567 = vadd.xlane.f32.xlu0 %v1566
        %v1568 = vpop.xlane.xlu0 %1567
        %v1569 = vadd.f32 %v1433, %v1435
        %1570 = vadd.xlane.f32.xlu0 %v1569
        %v1571 = vpop.xlane.xlu0 %1570
        %v1572 = vadd.f32 %v1437, %v1439
        %1573 = vadd.xlane.f32.xlu0 %v1572
        %v1574 = vpop.xlane.xlu0 %1573
        %v1575 = vadd.f32 %v1441, %v1443
        %1576 = vadd.xlane.f32.xlu0 %v1575
        %v1577 = vpop.xlane.xlu0 %1576
        %v1578 = vadd.f32 %v1445, %v1447
        %1579 = vadd.xlane.f32.xlu0 %v1578
        %v1580 = vpop.xlane.xlu0 %1579
        %v1581 = vadd.f32 %v1449, %v1451
        %1582 = vadd.xlane.f32.xlu0 %v1581
        %v1583 = vpop.xlane.xlu0 %1582
        %v1584 = vadd.f32 %v1453, %v1455
        %1585 = vadd.xlane.f32.xlu0 %v1584
        %v1586 = vpop.xlane.xlu0 %1585
        %v1587 = vadd.f32 %v1457, %v1459
        %1588 = vadd.xlane.f32.xlu0 %v1587
        %v1589 = vpop.xlane.xlu0 %1588
        %v1590 = vadd.f32 %v1461, %v1463
        %1591 = vadd.xlane.f32.xlu0 %v1590
        %v1592 = vpop.xlane.xlu0 %1591
        %v1593 = vadd.f32 %v1465, %v1467
        %1594 = vadd.xlane.f32.xlu0 %v1593
        %v1595 = vpop.xlane.xlu0 %1594
        %v1596 = vadd.f32 %v1468, %v1502
        %v1597 = vadd.f32 %v1469, %v1505
        %v1598 = vadd.f32 %v1470, %v1508
        %v1599 = vadd.f32 %v1471, %v1511
        %v1600 = vadd.f32 %v1472, %v1514
        %v1601 = vadd.f32 %v1473, %v1517
        %v1602 = vadd.f32 %v1474, %v1520
        %v1603 = vadd.f32 %v1475, %v1523
        %v1604 = vadd.f32 %v1476, %v1526
        %v1605 = vadd.f32 %v1477, %v1529
        %v1606 = vadd.f32 %v1478, %v1532
        %v1607 = vadd.f32 %v1479, %v1535
        %v1608 = vadd.f32 %v1480, %v1538
        %v1609 = vadd.f32 %v1481, %v1541
        %v1610 = vadd.f32 %v1482, %v1544
        %v1611 = vadd.f32 %v1483, %v1547
        %v1612 = vadd.f32 %v1484, %v1550
        %v1613 = vadd.f32 %v1485, %v1553
        %v1614 = vadd.f32 %v1486, %v1556
        %v1615 = vadd.f32 %v1487, %v1559
        %v1616 = vadd.f32 %v1488, %v1562
        %v1617 = vadd.f32 %v1489, %v1565
        %v1618 = vadd.f32 %v1490, %v1568
        %v1619 = vadd.f32 %v1491, %v1571
        %v1620 = vadd.f32 %v1492, %v1574
        %v1621 = vadd.f32 %v1493, %v1577
        %v1622 = vadd.f32 %v1494, %v1580
        %v1623 = vadd.f32 %v1495, %v1583
        %v1624 = vadd.f32 %v1496, %v1586
        %v1625 = vadd.f32 %v1497, %v1589
        %v1626 = vadd.f32 %v1498, %v1592
        %v1627 = vadd.f32 %v1499, %v1595
        %1628 = vmatprep.subr.mxu0 %v698
        %1629 = vmatpush1.xpose.msra.mxu0 %v697
        %1630 = vmatprep.subr.mxu0 0.0
        %1631 = vmatpush1.xpose.msra.mxu0 0.0
        %1632 = vmatprep.subr.mxu0 0.0
        %1633 = vmatpush1.xpose.msra.mxu0 0.0
        %1634 = vmatprep.subr.mxu0 0.0
        %1635 = vmatpush1.xpose.msra.mxu0 0.0
        %1636 = vmatprep.subr.mxu0 0.0
        %1637 = vmatpush1.xpose.msra.mxu0 0.0
        %1638 = vmatprep.subr.mxu0 0.0
        %1639 = vmatpush1.xpose.msra.mxu0 0.0
        %1640 = vmatprep.subr.mxu0 0.0
        %1641 = vmatpush1.xpose.msra.mxu0 0.0
        %1642 = vmatprep.subr.mxu0 0.0
        %1643 = vmatpush1.xpose.msra.mxu0 0.0
        %1644 = vmatprep.subr.mxu0 0.0
        %1645 = vmatpush1.xpose.msra.mxu0 0.0
        %1646 = vmatprep.subr.mxu0 0.0
        %1647 = vmatpush1.xpose.msra.mxu0 0.0
        %1648 = vmatprep.subr.mxu0 0.0
        %1649 = vmatpush1.xpose.msra.mxu0 0.0
        %1650 = vmatprep.subr.mxu0 0.0
        %1651 = vmatpush1.xpose.msra.mxu0 0.0
        %1652 = vmatprep.subr.mxu0 0.0
        %1653 = vmatpush1.xpose.msra.mxu0 0.0
        %1654 = vmatprep.subr.mxu0 0.0
        %1655 = vmatpush1.xpose.msra.mxu0 0.0
        %1656 = vmatprep.subr.mxu0 0.0
        %1657 = vmatpush1.xpose.msra.mxu0 0.0
        %1658 = vmatprep.subr.mxu0 0.0
        %1659 = vmatpush1.xpose.msra.mxu0 0.0
        %1660 = vmatprep.subr.mxu0 0.0
        %1661 = vmatpush1.xpose.msra.mxu0 0.0
        %1662 = vmatprep.subr.mxu0 0.0
        %1663 = vmatpush1.xpose.msra.mxu0 0.0
        %1664 = vmatprep.subr.mxu0 0.0
        %1665 = vmatpush1.xpose.msra.mxu0 0.0
        %1666 = vmatprep.subr.mxu0 0.0
        %1667 = vmatpush1.xpose.msra.mxu0 0.0
        %1668 = vmatprep.subr.mxu0 0.0
        %1669 = vmatpush1.xpose.msra.mxu0 0.0
        %1670 = vmatprep.subr.mxu0 0.0
        %1671 = vmatpush1.xpose.msra.mxu0 0.0
        %1672 = vmatprep.subr.mxu0 0.0
        %1673 = vmatpush1.xpose.msra.mxu0 0.0
        %1674 = vmatprep.subr.mxu0 0.0
        %1675 = vmatpush1.xpose.msra.mxu0 0.0
        %1676 = vmatprep.subr.mxu0 0.0
        %1677 = vmatpush1.xpose.msra.mxu0 0.0
        %1678 = vmatprep.subr.mxu0 0.0
        %1679 = vmatpush1.xpose.msra.mxu0 0.0
        %1680 = vmatprep.subr.mxu0 0.0
        %1681 = vmatpush1.xpose.msra.mxu0 0.0
        %1682 = vmatprep.subr.mxu0 0.0
        %1683 = vmatpush1.xpose.msra.mxu0 0.0
        %1684 = vmatprep.subr.mxu0 0.0
        %1685 = vmatpush1.xpose.msra.mxu0 0.0
        %1686 = vmatprep.subr.mxu0 0.0
        %1687 = vmatpush1.xpose.msra.mxu0 0.0
        %1688 = vmatprep.subr.mxu0 0.0
        %1689 = vmatpush1.xpose.msra.mxu0 0.0
        %1690 = vmatprep.subr.mxu0 0.0
        %1691 = vmatpush1.xpose.msra.mxu0 0.0
        %1692 = vmatprep.mubr.f32.mxu0 %v1343
        %1693 = vmatmul.mubr.f32.gmra.mrb[0].mxu0 %v1341
        %v1694 = vpop.f32.mrb[0].mxu0
        %v1695 = vadd.f32 0.0, %v1694
        %v1696 = vpop.f32.mrb[0].mxu0
        %1697 = vmatprep.mubr.f32.mxu0 %v1347
        %1698 = vmatmul.mubr.f32.gmra.mrb[0].mxu0 %v1345
        %v1699 = vpop.f32.mrb[0].mxu0
        %v1700 = vadd.f32 0.0, %v1699
        %v1701 = vpop.f32.mrb[0].mxu0
        %1702 = vmatprep.mubr.f32.mxu0 %v1351
        %1703 = vmatmul.mubr.f32.gmra.mrb[0].mxu0 %v1349
        %v1704 = vpop.f32.mrb[0].mxu0
        %v1705 = vadd.f32 0.0, %v1704
        %v1706 = vpop.f32.mrb[0].mxu0
        %1707 = vmatprep.mubr.f32.mxu0 %v1355
        %1708 = vmatmul.mubr.f32.gmra.mrb[0].mxu0 %v1353
        %v1709 = vpop.f32.mrb[0].mxu0
        %v1710 = vadd.f32 0.0, %v1709
        %v1711 = vpop.f32.mrb[0].mxu0
        %1712 = vmatprep.mubr.f32.mxu0 %v1359
        %1713 = vmatmul.mubr.f32.gmra.mrb[0].mxu0 %v1357
        %v1714 = vpop.f32.mrb[0].mxu0
        %v1715 = vadd.f32 0.0, %v1714
        %v1716 = vpop.f32.mrb[0].mxu0
        %1717 = vmatprep.mubr.f32.mxu0 %v1363
        %1718 = vmatmul.mubr.f32.gmra.mrb[0].mxu0 %v1361
        %v1719 = vpop.f32.mrb[0].mxu0
        %v1720 = vadd.f32 0.0, %v1719
        %v1721 = vpop.f32.mrb[0].mxu0
        %1722 = vmatprep.mubr.f32.mxu0 %v1367
        %1723 = vmatmul.mubr.f32.gmra.mrb[0].mxu0 %v1365
        %v1724 = vpop.f32.mrb[0].mxu0
        %v1725 = vadd.f32 0.0, %v1724
        %v1726 = vpop.f32.mrb[0].mxu0
        %1727 = vmatprep.mubr.f32.mxu0 %v1371
        %1728 = vmatmul.mubr.f32.gmra.mrb[0].mxu0 %v1369
        %v1729 = vpop.f32.mrb[0].mxu0
        %v1730 = vadd.f32 0.0, %v1729
        %v1731 = vpop.f32.mrb[0].mxu0
        %1732 = vmatprep.mubr.f32.mxu0 %v1375
        %1733 = vmatmul.mubr.f32.gmra.mrb[0].mxu0 %v1373
        %v1734 = vpop.f32.mrb[0].mxu0
        %v1735 = vadd.f32 0.0, %v1734
        %v1736 = vpop.f32.mrb[0].mxu0
        %1737 = vmatprep.mubr.f32.mxu0 %v1379
        %1738 = vmatmul.mubr.f32.gmra.mrb[0].mxu0 %v1377
        %v1739 = vpop.f32.mrb[0].mxu0
        %v1740 = vadd.f32 0.0, %v1739
        %v1741 = vpop.f32.mrb[0].mxu0
        %1742 = vmatprep.mubr.f32.mxu0 %v1383
        %1743 = vmatmul.mubr.f32.gmra.mrb[0].mxu0 %v1381
        %v1744 = vpop.f32.mrb[0].mxu0
        %v1745 = vadd.f32 0.0, %v1744
        %v1746 = vpop.f32.mrb[0].mxu0
        %1747 = vmatprep.mubr.f32.mxu0 %v1387
        %1748 = vmatmul.mubr.f32.gmra.mrb[0].mxu0 %v1385
        %v1749 = vpop.f32.mrb[0].mxu0
        %v1750 = vadd.f32 0.0, %v1749
        %v1751 = vpop.f32.mrb[0].mxu0
        %1752 = vmatprep.mubr.f32.mxu0 %v1391
        %1753 = vmatmul.mubr.f32.gmra.mrb[0].mxu0 %v1389
        %v1754 = vpop.f32.mrb[0].mxu0
        %v1755 = vadd.f32 0.0, %v1754
        %v1756 = vpop.f32.mrb[0].mxu0
        %1757 = vmatprep.mubr.f32.mxu0 %v1395
        %1758 = vmatmul.mubr.f32.gmra.mrb[0].mxu0 %v1393
        %v1759 = vpop.f32.mrb[0].mxu0
        %v1760 = vadd.f32 0.0, %v1759
        %v1761 = vpop.f32.mrb[0].mxu0
        %1762 = vmatprep.mubr.f32.mxu0 %v1399
        %1763 = vmatmul.mubr.f32.gmra.mrb[0].mxu0 %v1397
        %v1764 = vpop.f32.mrb[0].mxu0
        %v1765 = vadd.f32 0.0, %v1764
        %v1766 = vpop.f32.mrb[0].mxu0
        %1767 = vmatprep.mubr.f32.mxu0 %v1403
        %1768 = vmatmul.mubr.f32.gmra.mrb[0].mxu0 %v1401
        %v1769 = vpop.f32.mrb[0].mxu0
        %v1770 = vadd.f32 0.0, %v1769
        %v1771 = vpop.f32.mrb[0].mxu0
        %1772 = vmatprep.mubr.f32.mxu0 %v1407
        %1773 = vmatmul.mubr.f32.gmra.mrb[0].mxu0 %v1405
        %v1774 = vpop.f32.mrb[0].mxu0
        %v1775 = vadd.f32 0.0, %v1774
        %v1776 = vpop.f32.mrb[0].mxu0
        %1777 = vmatprep.mubr.f32.mxu0 %v1411
        %1778 = vmatmul.mubr.f32.gmra.mrb[0].mxu0 %v1409
        %v1779 = vpop.f32.mrb[0].mxu0
        %v1780 = vadd.f32 0.0, %v1779
        %v1781 = vpop.f32.mrb[0].mxu0
        %1782 = vmatprep.mubr.f32.mxu0 %v1415
        %1783 = vmatmul.mubr.f32.gmra.mrb[0].mxu0 %v1413
        %v1784 = vpop.f32.mrb[0].mxu0
        %v1785 = vadd.f32 0.0, %v1784
        %v1786 = vpop.f32.mrb[0].mxu0
        %1787 = vmatprep.mubr.f32.mxu0 %v1419
        %1788 = vmatmul.mubr.f32.gmra.mrb[0].mxu0 %v1417
        %v1789 = vpop.f32.mrb[0].mxu0
        %v1790 = vadd.f32 0.0, %v1789
        %v1791 = vpop.f32.mrb[0].mxu0
        %1792 = vmatprep.mubr.f32.mxu0 %v1423
        %1793 = vmatmul.mubr.f32.gmra.mrb[0].mxu0 %v1421
        %v1794 = vpop.f32.mrb[0].mxu0
        %v1795 = vadd.f32 0.0, %v1794
        %v1796 = vpop.f32.mrb[0].mxu0
        %1797 = vmatprep.mubr.f32.mxu0 %v1427
        %1798 = vmatmul.mubr.f32.gmra.mrb[0].mxu0 %v1425
        %v1799 = vpop.f32.mrb[0].mxu0
        %v1800 = vadd.f32 0.0, %v1799
        %v1801 = vpop.f32.mrb[0].mxu0
        %1802 = vmatprep.mubr.f32.mxu0 %v1431
        %1803 = vmatmul.mubr.f32.gmra.mrb[0].mxu0 %v1429
        %v1804 = vpop.f32.mrb[0].mxu0
        %v1805 = vadd.f32 0.0, %v1804
        %v1806 = vpop.f32.mrb[0].mxu0
        %1807 = vmatprep.mubr.f32.mxu0 %v1435
        %1808 = vmatmul.mubr.f32.gmra.mrb[0].mxu0 %v1433
        %v1809 = vpop.f32.mrb[0].mxu0
        %v1810 = vadd.f32 0.0, %v1809
        %v1811 = vpop.f32.mrb[0].mxu0
        %1812 = vmatprep.mubr.f32.mxu0 %v1439
        %1813 = vmatmul.mubr.f32.gmra.mrb[0].mxu0 %v1437
        %v1814 = vpop.f32.mrb[0].mxu0
        %v1815 = vadd.f32 0.0, %v1814
        %v1816 = vpop.f32.mrb[0].mxu0
        %1817 = vmatprep.mubr.f32.mxu0 %v1443
        %1818 = vmatmul.mubr.f32.gmra.mrb[0].mxu0 %v1441
        %v1819 = vpop.f32.mrb[0].mxu0
        %v1820 = vadd.f32 0.0, %v1819
        %v1821 = vpop.f32.mrb[0].mxu0
        %1822 = vmatprep.mubr.f32.mxu0 %v1447
        %1823 = vmatmul.mubr.f32.gmra.mrb[0].mxu0 %v1445
        %v1824 = vpop.f32.mrb[0].mxu0
        %v1825 = vadd.f32 0.0, %v1824
        %v1826 = vpop.f32.mrb[0].mxu0
        %1827 = vmatprep.mubr.f32.mxu0 %v1451
        %1828 = vmatmul.mubr.f32.gmra.mrb[0].mxu0 %v1449
        %v1829 = vpop.f32.mrb[0].mxu0
        %v1830 = vadd.f32 0.0, %v1829
        %v1831 = vpop.f32.mrb[0].mxu0
        %1832 = vmatprep.mubr.f32.mxu0 %v1455
        %1833 = vmatmul.mubr.f32.gmra.mrb[0].mxu0 %v1453
        %v1834 = vpop.f32.mrb[0].mxu0
        %v1835 = vadd.f32 0.0, %v1834
        %v1836 = vpop.f32.mrb[0].mxu0
        %1837 = vmatprep.mubr.f32.mxu0 %v1459
        %1838 = vmatmul.mubr.f32.gmra.mrb[0].mxu0 %v1457
        %v1839 = vpop.f32.mrb[0].mxu0
        %v1840 = vadd.f32 0.0, %v1839
        %v1841 = vpop.f32.mrb[0].mxu0
        %1842 = vmatprep.mubr.f32.mxu0 %v1463
        %1843 = vmatmul.mubr.f32.gmra.mrb[0].mxu0 %v1461
        %v1844 = vpop.f32.mrb[0].mxu0
        %v1845 = vadd.f32 0.0, %v1844
        %v1846 = vpop.f32.mrb[0].mxu0
        %1847 = vmatprep.mubr.f32.mxu0 %v1467
        %1848 = vmatmul.mubr.f32.gmra.mrb[0].mxu0 %v1465
        %v1849 = vpop.f32.mrb[0].mxu0
        %v1850 = vadd.f32 0.0, %v1849
        %v1851 = vpop.f32.mrb[0].mxu0
        %1852 = vdwg.mxu0
        %v1853 = vadd.f32 %v1468, %v1695
        %v1854 = vadd.f32 %v1469, %v1700
        %v1855 = vadd.f32 %v1470, %v1705
        %v1856 = vadd.f32 %v1471, %v1710
        %v1857 = vadd.f32 %v1472, %v1715
        %v1858 = vadd.f32 %v1473, %v1720
        %v1859 = vadd.f32 %v1474, %v1725
        %v1860 = vadd.f32 %v1475, %v1730
        %v1861 = vadd.f32 %v1476, %v1735
        %v1862 = vadd.f32 %v1477, %v1740
        %v1863 = vadd.f32 %v1478, %v1745
        %v1864 = vadd.f32 %v1479, %v1750
        %v1865 = vadd.f32 %v1480, %v1755
        %v1866 = vadd.f32 %v1481, %v1760
        %v1867 = vadd.f32 %v1482, %v1765
        %v1868 = vadd.f32 %v1483, %v1770
        %v1869 = vadd.f32 %v1484, %v1775
        %v1870 = vadd.f32 %v1485, %v1780
        %v1871 = vadd.f32 %v1486, %v1785
        %v1872 = vadd.f32 %v1487, %v1790
        %v1873 = vadd.f32 %v1488, %v1795
        %v1874 = vadd.f32 %v1489, %v1800
        %v1875 = vadd.f32 %v1490, %v1805
        %v1876 = vadd.f32 %v1491, %v1810
        %v1877 = vadd.f32 %v1492, %v1815
        %v1878 = vadd.f32 %v1493, %v1820
        %v1879 = vadd.f32 %v1494, %v1825
        %v1880 = vadd.f32 %v1495, %v1830
        %v1881 = vadd.f32 %v1496, %v1835
        %v1882 = vadd.f32 %v1497, %v1840
        %v1883 = vadd.f32 %v1498, %v1845
        %v1884 = vadd.f32 %v1499, %v1850
        %v1885 = vrcp.pop %v1596
        %v1886 = vrcp.pop %v1597
        %v1887 = vrcp.pop %v1598
        %v1888 = vrcp.pop %v1599
        %v1889 = vrcp.pop %v1600
        %v1890 = vrcp.pop %v1601
        %v1891 = vrcp.pop %v1602
        %v1892 = vrcp.pop %v1603
        %v1893 = vrcp.pop %v1604
        %v1894 = vrcp.pop %v1605
        %v1895 = vrcp.pop %v1606
        %v1896 = vrcp.pop %v1607
        %v1897 = vrcp.pop %v1608
        %v1898 = vrcp.pop %v1609
        %v1899 = vrcp.pop %v1610
        %v1900 = vrcp.pop %v1611
        %v1901 = vrcp.pop %v1612
        %v1902 = vrcp.pop %v1613
        %v1903 = vrcp.pop %v1614
        %v1904 = vrcp.pop %v1615
        %v1905 = vrcp.pop %v1616
        %v1906 = vrcp.pop %v1617
        %v1907 = vrcp.pop %v1618
        %v1908 = vrcp.pop %v1619
        %v1909 = vrcp.pop %v1620
        %v1910 = vrcp.pop %v1621
        %v1911 = vrcp.pop %v1622
        %v1912 = vrcp.pop %v1623
        %v1913 = vrcp.pop %v1624
        %v1914 = vrcp.pop %v1625
        %v1915 = vrcp.pop %v1626
        %v1916 = vrcp.pop %v1627
        %v1917 = vmul.f32 %v1853, %v1885
        %v1918 = vmul.f32 %v1854, %v1886
        %v1919 = vmul.f32 %v1855, %v1887
        %v1920 = vmul.f32 %v1856, %v1888
        %v1921 = vmul.f32 %v1857, %v1889
        %v1922 = vmul.f32 %v1858, %v1890
        %v1923 = vmul.f32 %v1859, %v1891
        %v1924 = vmul.f32 %v1860, %v1892
        %v1925 = vmul.f32 %v1861, %v1893
        %v1926 = vmul.f32 %v1862, %v1894
        %v1927 = vmul.f32 %v1863, %v1895
        %v1928 = vmul.f32 %v1864, %v1896
        %v1929 = vmul.f32 %v1865, %v1897
        %v1930 = vmul.f32 %v1866, %v1898
        %v1931 = vmul.f32 %v1867, %v1899
        %v1932 = vmul.f32 %v1868, %v1900
        %v1933 = vmul.f32 %v1869, %v1901
        %v1934 = vmul.f32 %v1870, %v1902
        %v1935 = vmul.f32 %v1871, %v1903
        %v1936 = vmul.f32 %v1872, %v1904
        %v1937 = vmul.f32 %v1873, %v1905
        %v1938 = vmul.f32 %v1874, %v1906
        %v1939 = vmul.f32 %v1875, %v1907
        %v1940 = vmul.f32 %v1876, %v1908
        %v1941 = vmul.f32 %v1877, %v1909
        %v1942 = vmul.f32 %v1878, %v1910
        %v1943 = vmul.f32 %v1879, %v1911
        %v1944 = vmul.f32 %v1880, %v1912
        %v1945 = vmul.f32 %v1881, %v1913
        %v1946 = vmul.f32 %v1882, %v1914
        %v1947 = vmul.f32 %v1883, %v1915
        %v1948 = vmul.f32 %v1884, %v1916
        %1949 = vxpose.xlu0.b32.start [1/16] %v1917, 128
        %1950 = vxpose.xlu0.b32.cont [2/16] %v1918, 128
        %1951 = vxpose.xlu0.b32.cont [3/16] %v1919, 128
        %1952 = vxpose.xlu0.b32.cont [4/16] %v1920, 128
        %1953 = vxpose.xlu0.b32.cont [5/16] %v1921, 128
        %1954 = vxpose.xlu0.b32.cont [6/16] %v1922, 128
        %1955 = vxpose.xlu0.b32.cont [7/16] %v1923, 128
        %1956 = vxpose.xlu0.b32.cont [8/16] %v1924, 128
        %1957 = vxpose.xlu0.b32.cont [9/16] %v1925, 128
        %1958 = vxpose.xlu0.b32.cont [10/16] %v1926, 128
        %1959 = vxpose.xlu0.b32.cont [11/16] %v1927, 128
        %1960 = vxpose.xlu0.b32.cont [12/16] %v1928, 128
        %1961 = vxpose.xlu0.b32.cont [13/16] %v1929, 128
        %1962 = vxpose.xlu0.b32.cont [14/16] %v1930, 128
        %1963 = vxpose.xlu0.b32.cont [15/16] %v1931, 128
        %1964 = vxpose.xlu0.b32.end [16/16] %v1932, 128
        %v1965 = vpop.trf.xlu0
        %v1966 = vpop.trf.xlu0
        %v1967 = vpop.trf.xlu0
        %v1968 = vpop.trf.xlu0
        %v1969 = vpop.trf.xlu0
        %v1970 = vpop.trf.xlu0
        %v1971 = vpop.trf.xlu0
        %v1972 = vpop.trf.xlu0
        %v1973 = vpop.trf.xlu0
        %v1974 = vpop.trf.xlu0
        %v1975 = vpop.trf.xlu0
        %v1976 = vpop.trf.xlu0
        %v1977 = vpop.trf.xlu0
        %v1978 = vpop.trf.xlu0
        %v1979 = vpop.trf.xlu0
        %v1980 = vpop.trf.xlu0
        %1981 = vxpose.xlu0.b32.start [1/16] %v1933, 128
        %1982 = vxpose.xlu0.b32.cont [2/16] %v1934, 128
        %1983 = vxpose.xlu0.b32.cont [3/16] %v1935, 128
        %1984 = vxpose.xlu0.b32.cont [4/16] %v1936, 128
        %1985 = vxpose.xlu0.b32.cont [5/16] %v1937, 128
        %1986 = vxpose.xlu0.b32.cont [6/16] %v1938, 128
        %1987 = vxpose.xlu0.b32.cont [7/16] %v1939, 128
        %1988 = vxpose.xlu0.b32.cont [8/16] %v1940, 128
        %1989 = vxpose.xlu0.b32.cont [9/16] %v1941, 128
        %1990 = vxpose.xlu0.b32.cont [10/16] %v1942, 128
        %1991 = vxpose.xlu0.b32.cont [11/16] %v1943, 128
        %1992 = vxpose.xlu0.b32.cont [12/16] %v1944, 128
        %1993 = vxpose.xlu0.b32.cont [13/16] %v1945, 128
        %1994 = vxpose.xlu0.b32.cont [14/16] %v1946, 128
        %1995 = vxpose.xlu0.b32.cont [15/16] %v1947, 128
        %1996 = vxpose.xlu0.b32.end [16/16] %v1948, 128
        %v1997 = vpop.trf.xlu0
        %v1998 = vpop.trf.xlu0
        %v1999 = vpop.trf.xlu0
        %v2000 = vpop.trf.xlu0
        %v2001 = vpop.trf.xlu0
        %v2002 = vpop.trf.xlu0
        %v2003 = vpop.trf.xlu0
        %v2004 = vpop.trf.xlu0
        %v2005 = vpop.trf.xlu0
        %v2006 = vpop.trf.xlu0
        %v2007 = vpop.trf.xlu0
        %v2008 = vpop.trf.xlu0
        %v2009 = vpop.trf.xlu0
        %v2010 = vpop.trf.xlu0
        %v2011 = vpop.trf.xlu0
        %v2012 = vpop.trf.xlu0
        %v2013 = vadd.f32 %v303, %v1965
        %v2014 = vadd.f32 %v304, %v1997
        %2015 = vst [vmem:[%s200] sm:$0xff] %v2013
        %2016 = vst [vmem:[%s200 + $0x8] sm:$0xff] %v2014
        %s2017 = sand.u32 %s110, 1
        %s2018 = scalar_lea.sflag [#allocation5], %s2017
        %s2019 = sand.u32 %s110, 1
        %s2020 = smul.addr %s2019, 16
        %s2021 = scalar_lea.vmem [#allocation6], %s2020
        // Predicated region
        $region41: #{tpu_custom_call.1} parent=31 // pred_check
          %p2022 = pneg %p120
        $region42: #{tpu_custom_call.1} parent=31 // pred_check_branch
          %2024 = sbr.rel (%p2022) target = $region44
        $region43: #{tpu_custom_call.1} parent=31 // pred_region
          %s2025 = smul.u32 2, %s25
          %s2027 = ssub.s32 256, 256
          %2028 = vsyncadd %s2018, %s2027
          %s2029 = smul.addr %s24, 2
          %s2030 = sadd.s32 %s2025, %s2029
          %s2031 = smul.addr %s2030, 128
          %s2032 = scalar_lea.hbm %s3, %s2031
          %s2034 = sshll.u32 %s2021, 4
          %s2035 = int_to_ptr.vmem [resolvable:$true] %s2034
          %2037 = dma.vmem_to_hbm [thread:$0]  %s2035, 256, %s2032, %s2018
        $region44: #{tpu_custom_call.1} parent=31 // pred_fallthru
          _
      $region32: #{tpu_custom_call.1} parent=5 // pred_fallthru
        _
      %p2038 = scmp.le.s32.totalorder 2, %s15
      // Predicated region
      $region45: #{tpu_custom_call.1} parent=5 // pred_check
        %p2039 = pneg %p2038
      $region46: #{tpu_custom_call.1} parent=5 // pred_check_branch
        %2041 = sbr.rel (%p2039) target = $region48
      $region47: #{tpu_custom_call.1} parent=5 // pred_region
        %s2042 = ssub.s32 %s15, 2
        // Predicated region
        $region49: #{tpu_custom_call.1} parent=47 // pred_check
          %p2043 = pneg %p126
        $region50: #{tpu_custom_call.1} parent=47 // pred_check_branch
          %2045 = sbr.rel (%p2043) target = $region52
        $region51: #{tpu_custom_call.1} parent=47 // pred_region
          %s2046 = sand.u32 %s111, 1
          %s2047 = scalar_lea.sflag [#allocation5], %s2046
          %s2048 = sand.u32 %s111, 1
          %s2049 = smul.addr %s2048, 16
          %s2050 = scalar_lea.vmem [#allocation6], %s2049
          %2051 = dma.done %s2047, 256
        $region52: #{tpu_custom_call.1} parent=47 // pred_fallthru
          _
      $region48: #{tpu_custom_call.1} parent=5 // pred_fallthru
        _
    $region6: #{tpu_custom_call.1} parent=1 // loop_footer
      %s19 = sadd.s32 1, %s15
    $region7: #{tpu_custom_call.1} parent=1 // loop_footer_branch
      %14 = sbr.rel target = $region3
    $region8: #{tpu_custom_call.1} parent=1 // loop_exit
      _
    %2052 = vsyncpa [#allocation4], 1
    %s2053 = scalar_lea.sflag [#allocation4], 1
    %2054 = vsyncpa %s2053, 1
    %2055 = vsyncpa [#allocation5], 1
    %s2056 = scalar_lea.sflag [#allocation5], 1
    %2057 = vsyncpa %s2056, 1

</llo_original>
